<compile_context>
chip_gen: v7x
topology: tpu7x:2x2x1
jax: 0.10.0
libtpu: 0.0.40
codegen_flags: <defaults>
</compile_context>

<pallas_src>
import math
import functools

import jax
import jax.numpy as jnp
from jax.experimental import pallas as pl
from jax.experimental.pallas import tpu as pltpu


def _layer_norm(x, gamma, beta, eps=1e-5):
    """Fused residual epilogue LayerNorm with one-pass mean/variance."""
    inv_n = 1.0 / x.shape[-1]
    mean = jnp.sum(x, axis=-1, keepdims=True) * inv_n
    msq = jnp.sum(x * x, axis=-1, keepdims=True) * inv_n
    var = msq - mean * mean
    return (x - mean) * jax.lax.rsqrt(var + eps) * gamma + beta


def encoder_block_kernel(
    x_ref,        # (1, S, D)   f32   full sequence for this batch element
    wqkv_ref,     # (D, 3*Dh)   cd    [Wq*scale | Wk | Wv], head-major columns
    bqkv_ref,     # (1, 3*Dh)   f32
    wo_ref,       # (Dh, D)     cd
    w1_ref,       # (D, F)      cd
    b1_ref,       # (1, F)      f32
    w2_ref,       # (F, D)      cd
    vec_ref,      # (6, D)      f32   rows: bo, g1, be1, b2, g2, be2
    o_ref,        # (1, TQ, D)  f32
    qkv_sc,       # (S, 3*Dh)   cd    scratch: cached QKV for the whole sequence
    attn_sc,      # (TQ, Dh)    cd    scratch: concatenated head outputs
    *, num_heads, dim_k,
):
    S = x_ref.shape[1]
    TQ = o_ref.shape[1]
    H, dk = num_heads, dim_k
    Dh = H * dk
    cd = qkv_sc.dtype                      # compute (MXU input) dtype
    qi = pl.program_id(1)

    # ---- once per batch element: fused QKV projection for the whole sequence
    @pl.when(qi == 0)
    def _():
        xc = x_ref[0].astype(cd)                                        # (S, D)
        qkv = jnp.dot(xc, wqkv_ref[...], preferred_element_type=jnp.float32)
        qkv_sc[...] = (qkv + bqkv_ref[0]).astype(cd)                    # (S, 3Dh)

    row0 = pl.multiple_of(qi * TQ, TQ)
    x_tile = x_ref[0, pl.ds(row0, TQ), :]                               # (TQ, D) f32

    q_tile = qkv_sc[pl.ds(row0, TQ), pl.ds(0, Dh)]                      # (TQ, Dh), pre-scaled
    k_all = qkv_sc[:, Dh:2 * Dh]                                        # (S, Dh)
    v_all = qkv_sc[:, 2 * Dh:3 * Dh]                                    # (S, Dh)

    # ---- attention, head by head; outputs go into lane slices of attn_sc ----
    for h in range(H):
        lo, hi = h * dk, (h + 1) * dk
        q_h = q_tile[:, lo:hi]                                          # (TQ, dk)
        k_h = k_all[:, lo:hi]                                           # (S, dk)
        v_h = v_all[:, lo:hi]                                           # (S, dk)
        # q_h @ k_h^T without materializing a transpose (contract last dims).
        s = jax.lax.dot_general(q_h, k_h, (((1,), (1,)), ((), ())),
                                preferred_element_type=jnp.float32)     # (TQ, S)
        s = s - jnp.max(s, axis=-1, keepdims=True)
        p = jnp.exp(s)
        p = p * pl.reciprocal(jnp.sum(p, axis=-1, keepdims=True), approx=True)
        o_h = jnp.dot(p.astype(cd), v_h, preferred_element_type=jnp.float32)
        attn_sc[:, lo:hi] = o_h.astype(cd)

    vec = vec_ref[...]
    bo, g1, be1 = vec[0:1], vec[1:2], vec[2:3]
    b2, g2, be2 = vec[3:4], vec[4:5], vec[5:6]

    # ---- output projection + residual + LayerNorm (dropout = identity) ----
    mha = jnp.dot(attn_sc[...], wo_ref[...],
                  preferred_element_type=jnp.float32) + bo
    y = _layer_norm(x_tile + mha, g1, be1)                              # (TQ, D) f32

    # ---- feed-forward + residual + LayerNorm ----
    h1 = jnp.dot(y.astype(cd), w1_ref[...],
                 preferred_element_type=jnp.float32) + b1_ref[0]
    h1 = jnp.maximum(h1, 0.0)
    ffo = jnp.dot(h1.astype(cd), w2_ref[...],
                  preferred_element_type=jnp.float32) + b2

    o_ref[0] = _layer_norm(y + ffo, g2, be2)


def encoder_block(x, params, *, num_heads, dim_k, q_tile=None,
                  compute_dtype=jnp.float32):
    B, S, D = x.shape
    H, dk = num_heads, dim_k
    Dh = H * dk
    TQ = S if q_tile is None else q_tile
    assert S % TQ == 0 and (TQ == S or TQ % 8 == 0), "q_tile must divide S (mult of 8)"
    nq = S // TQ

    (wq, bq, wk, bk, wv, bv, wo, bo,
     g1, be1, w1, b1, w2, b2, g2, be2) = params
    F = w1.shape[1]

    # ---- one-time parameter packing (outside the kernel) ----
    scale = 1.0 / math.sqrt(dk)            # fold score scale into Wq / bq
    wqkv = jnp.concatenate(
        [(wq * scale).transpose(1, 0, 2).reshape(D, Dh),
         wk.transpose(1, 0, 2).reshape(D, Dh),
         wv.transpose(1, 0, 2).reshape(D, Dh)], axis=1).astype(compute_dtype)
    bqkv = jnp.concatenate(
        [(bq * scale).reshape(-1), bk.reshape(-1), bv.reshape(-1)])[None, :]
    vec = jnp.concatenate([bo, g1, be1, b2, g2, be2], axis=0)           # (6, D)
    wo_c = wo.astype(compute_dtype)
    w1_c = w1.astype(compute_dtype)
    w2_c = w2.astype(compute_dtype)

    const = lambda a: pl.BlockSpec(a.shape, lambda b, q: (0,) * a.ndim)
    kernel = functools.partial(encoder_block_kernel, num_heads=H, dim_k=dk)

    # ---- explicit VMEM budget (double-buffered blocks + scratch + slack) ----
    cdb = jnp.dtype(compute_dtype).itemsize
    block_bytes = (S * D * 4 + TQ * D * 4 + 3 * Dh * 4 + F * 4 + 6 * D * 4
                   + (D * 3 * Dh + Dh * D + D * F + F * D) * cdb)
    scratch_bytes = (S * 3 * Dh + TQ * Dh) * cdb
    vmem_limit = int(min(64 << 20,
                         max(2 * block_bytes + scratch_bytes + (4 << 20),
                             16 << 20)))

    return pl.pallas_call(
        kernel,
        out_shape=jax.ShapeDtypeStruct((B, S, D), jnp.float32),
        grid_spec=pltpu.PrefetchScalarGridSpec(
            num_scalar_prefetch=0,
            grid=(B, nq),
            in_specs=[
                pl.BlockSpec((1, S, D), lambda b, q: (b, 0, 0)),
                const(wqkv), const(bqkv), const(wo_c),
                const(w1_c), const(b1), const(w2_c), const(vec),
            ],
            out_specs=pl.BlockSpec((1, TQ, D), lambda b, q: (b, q, 0)),
            scratch_shapes=[
                pltpu.VMEM((S, 3 * Dh), compute_dtype),   # cached Q,K,V
                pltpu.VMEM((TQ, Dh), compute_dtype),      # concat head outputs
            ],
        ),
        compiler_params=pltpu.CompilerParams(
            dimension_semantics=("parallel", "arbitrary"),
            vmem_limit_bytes=vmem_limit,
        ),
    )(x, wqkv, bqkv, wo_c, w1_c, b1, w2_c, vec)


def make_params(key, dim_model, num_heads, dim_ff):
    dim_k = dim_v = dim_model // num_heads
    ks = jax.random.split(key, 12)
    u = lambda k, shape, fan_in: jax.random.uniform(
        k, shape, jnp.float32, -1.0 / math.sqrt(fan_in), 1.0 / math.sqrt(fan_in))

    wq = u(ks[0], (num_heads, dim_model, dim_k), dim_model)
    bq = u(ks[1], (num_heads, dim_k), dim_model)
    wk = u(ks[2], (num_heads, dim_model, dim_k), dim_model)
    bk = u(ks[3], (num_heads, dim_k), dim_model)
    wv = u(ks[4], (num_heads, dim_model, dim_v), dim_model)
    bv = u(ks[5], (num_heads, dim_v), dim_model)
    wo = u(ks[6], (num_heads * dim_v, dim_model), num_heads * dim_v)
    bo = u(ks[7], (1, dim_model), num_heads * dim_v)
    g1 = jnp.ones((1, dim_model), jnp.float32)
    be1 = jnp.zeros((1, dim_model), jnp.float32)
    w1 = u(ks[8], (dim_model, dim_ff), dim_model)
    b1 = u(ks[9], (1, dim_ff), dim_model)
    w2 = u(ks[10], (dim_ff, dim_model), dim_ff)
    b2 = u(ks[11], (1, dim_model), dim_ff)
    g2 = jnp.ones((1, dim_model), jnp.float32)
    be2 = jnp.zeros((1, dim_model), jnp.float32)
    return (wq, bq, wk, bk, wv, bv, wo, bo, g1, be1, w1, b1, w2, b2, g2, be2)


def reference(x, params, num_heads, dim_k):
    (wq, bq, wk, bk, wv, bv, wo, bo,
     g1, be1, w1, b1, w2, b2, g2, be2) = params
    heads = []
    for h in range(num_heads):
        q = x @ wq[h] + bq[h]
        k = x @ wk[h] + bk[h]
        v = x @ wv[h] + bv[h]
        s = jnp.einsum("bsd,btd->bst", q, k) / math.sqrt(dim_k)
        p = jax.nn.softmax(s, axis=-1)
        heads.append(jnp.einsum("bst,btd->bsd", p, v))
    mha = jnp.concatenate(heads, axis=-1) @ wo + bo[0]
    ln = lambda t, g, b: (t - t.mean(-1, keepdims=True)) / jnp.sqrt(
        t.var(-1, keepdims=True) + 1e-5) * g + b
    y = ln(x + mha, g1[0], be1[0])
    ff = jnp.maximum(y @ w1 + b1[0], 0.0) @ w2 + b2[0]
    return ln(y + ff, g2[0], be2[0])


if __name__ == "__main__":
    # Small but lane-dense shapes (D, F, 3*H*dk are multiples of 128).
    B, S = 2, 16
    dim_model, num_heads, dim_ff = 128, 4, 256
    dim_k = dim_model // num_heads  # 32

    key = jax.random.PRNGKey(0)
    kx, kp = jax.random.split(key)
    x = jax.random.normal(kx, (B, S, dim_model), jnp.float32)
    params = make_params(kp, dim_model, num_heads, dim_ff)

    ref = reference(x, params, num_heads, dim_k)

    # f32 MXU path (exact up to approx-reciprocal / scale-folding rounding).
    out = encoder_block(x, params, num_heads=num_heads, dim_k=dim_k, q_tile=8)
    out = jax.block_until_ready(out)
    assert out.shape == (B, S, dim_model)
    err = float(jnp.max(jnp.abs(out - ref)))
    assert jnp.allclose(out, ref, atol=5e-3, rtol=5e-3), f"f32 path max err {err}"

    # bf16 MXU path (f32 accumulation) — looser tolerance expected.
    out_bf16 = encoder_block(x, params, num_heads=num_heads, dim_k=dim_k,
                             q_tile=8, compute_dtype=jnp.bfloat16)
    out_bf16 = jax.block_until_ready(out_bf16)
    err_bf16 = float(jnp.max(jnp.abs(out_bf16 - ref)))
    assert jnp.allclose(out_bf16, ref, atol=1.5e-1, rtol=1.5e-1), \
        f"bf16 path max err {err_bf16}"

    print("KERNEL_OK")
</pallas_src>

<mosaic_0001>
module attributes {stable_mosaic.version = 11 : i64} {
  func.func @encoder_block_kernel(%arg0: i32, %arg1: i32, %arg2: memref<1x16x128xf32, #tpu.memory_space<vmem>>, %arg3: memref<128x384xf32, #tpu.memory_space<vmem>>, %arg4: memref<1x384xf32, #tpu.memory_space<vmem>>, %arg5: memref<128x128xf32, #tpu.memory_space<vmem>>, %arg6: memref<128x256xf32, #tpu.memory_space<vmem>>, %arg7: memref<1x256xf32, #tpu.memory_space<vmem>>, %arg8: memref<256x128xf32, #tpu.memory_space<vmem>>, %arg9: memref<6x128xf32, #tpu.memory_space<vmem>>, %arg10: memref<1x8x128xf32, #tpu.memory_space<vmem>>, %arg11: memref<16x384xf32, #tpu.memory_space<vmem>>, %arg12: memref<8x128xf32, #tpu.memory_space<vmem>>) attributes {dimension_semantics = [#tpu.dimension_semantics<parallel>, #tpu.dimension_semantics<arbitrary>], iteration_bounds = array<i64: 2, 2>, scalar_prefetch = 0 : i64, scratch_operands = 2 : i64, tpu.core_type = #tpu.core_type<tc>, window_params = [{transform_indices = @transform_0, window_bounds = array<i64: 1, 16, 128>}, {pipeline_mode = #tpu.pipeline_mode<synchronous>, transform_indices = @transform_1, window_bounds = array<i64: 128, 384>}, {pipeline_mode = #tpu.pipeline_mode<synchronous>, transform_indices = @transform_2, window_bounds = array<i64: 1, 384>}, {pipeline_mode = #tpu.pipeline_mode<synchronous>, transform_indices = @transform_3, window_bounds = array<i64: 128, 128>}, {pipeline_mode = #tpu.pipeline_mode<synchronous>, transform_indices = @transform_4, window_bounds = array<i64: 128, 256>}, {pipeline_mode = #tpu.pipeline_mode<synchronous>, transform_indices = @transform_5, window_bounds = array<i64: 1, 256>}, {pipeline_mode = #tpu.pipeline_mode<synchronous>, transform_indices = @transform_6, window_bounds = array<i64: 256, 128>}, {pipeline_mode = #tpu.pipeline_mode<synchronous>, transform_indices = @transform_7, window_bounds = array<i64: 6, 128>}, {transform_indices = @transform_8, window_bounds = array<i64: 1, 8, 128>}]} {
    %c0_i32 = arith.constant 0 : i32
    %0 = arith.cmpi eq, %arg1, %c0_i32 : i32
    %1 = arith.extui %0 : i1 to i32
    %c0_i32_0 = arith.constant 0 : i32
    %2 = arith.cmpi ne, %1, %c0_i32_0 : i32
    scf.if %2 {
      %c0_54 = arith.constant 0 : index
      %c0_55 = arith.constant 0 : index
      %c0_56 = arith.constant 0 : index
      %150 = vector.load %arg2[%c0_54, %c0_55, %c0_56] : memref<1x16x128xf32, #tpu.memory_space<vmem>>, vector<1x16x128xf32>
      %151 = vector.shape_cast %150 : vector<1x16x128xf32> to vector<16x128xf32>
      %c0_57 = arith.constant 0 : index
      %c0_58 = arith.constant 0 : index
      %152 = vector.load %arg3[%c0_57, %c0_58] : memref<128x384xf32, #tpu.memory_space<vmem>>, vector<128x384xf32>
      %cst_59 = arith.constant dense<0.000000e+00> : vector<16x384xf32>
      %153 = tpu.matmul %151, %152, %cst_59 {dimension_numbers = #tpu.dot_dimension_numbers<[1], [0], [0], [1], [0, 0, 1, 1], [], []>} : vector<16x128xf32>, vector<128x384xf32>, vector<16x384xf32> -> vector<16x384xf32>
      %c0_60 = arith.constant 0 : index
      %c0_61 = arith.constant 0 : index
      %154 = vector.load %arg4[%c0_60, %c0_61] : memref<1x384xf32, #tpu.memory_space<vmem>>, vector<1x384xf32>
      %155 = vector.shape_cast %154 : vector<1x384xf32> to vector<384xf32>
      %156 = vector.shape_cast %155 : vector<384xf32> to vector<1x384xf32>
      %157 = vector.broadcast %156 : vector<1x384xf32> to vector<16x384xf32>
      %158 = arith.addf %153, %157 : vector<16x384xf32>
      %c0_62 = arith.constant 0 : index
      %c0_63 = arith.constant 0 : index
      %159 = vector.load %arg11[%c0_62, %c0_63] : memref<16x384xf32, #tpu.memory_space<vmem>>, vector<16x384xf32>
      tpu.vector_store %arg11[%c0_62, %c0_63], %158 {strides = array<i32>} : memref<16x384xf32, #tpu.memory_space<vmem>>, vector<16x384xf32>,
    } else {
    }
    %c8_i32 = arith.constant 8 : i32
    %3 = arith.muli %arg1, %c8_i32 : i32
    %4 = tpu.assume_multiple %3, 8 : i32
    %c0 = arith.constant 0 : index
    %5 = arith.index_cast %4 : i32 to index
    %c0_1 = arith.constant 0 : index
    %6 = vector.load %arg2[%c0, %5, %c0_1] : memref<1x16x128xf32, #tpu.memory_space<vmem>>, vector<1x8x128xf32>
    %7 = vector.shape_cast %6 : vector<1x8x128xf32> to vector<8x128xf32>
    %8 = arith.index_cast %4 : i32 to index
    %c0_2 = arith.constant 0 : index
    %9 = vector.load %arg11[%8, %c0_2] : memref<16x384xf32, #tpu.memory_space<vmem>>, vector<8x128xf32>
    %c0_3 = arith.constant 0 : index
    %c128 = arith.constant 128 : index
    %10 = vector.load %arg11[%c0_3, %c128] : memref<16x384xf32, #tpu.memory_space<vmem>>, vector<16x128xf32>
    %c0_4 = arith.constant 0 : index
    %c256 = arith.constant 256 : index
    %11 = vector.load %arg11[%c0_4, %c256] : memref<16x384xf32, #tpu.memory_space<vmem>>, vector<16x128xf32>
    %12 = vector.extract_strided_slice %9 {offsets = [0, 0], sizes = [8, 32], strides = [1, 1]} : vector<8x128xf32> to vector<8x32xf32>
    %13 = vector.extract_strided_slice %10 {offsets = [0, 0], sizes = [16, 32], strides = [1, 1]} : vector<16x128xf32> to vector<16x32xf32>
    %14 = vector.extract_strided_slice %11 {offsets = [0, 0], sizes = [16, 32], strides = [1, 1]} : vector<16x128xf32> to vector<16x32xf32>
    %cst = arith.constant dense<0.000000e+00> : vector<8x16xf32>
    %15 = tpu.matmul %12, %13, %cst {dimension_numbers = #tpu.dot_dimension_numbers<[1], [1], [0], [0], [0, 0, 1, 0], [], []>} : vector<8x32xf32>, vector<16x32xf32>, vector<8x16xf32> -> vector<8x16xf32>
    %cst_5 = arith.constant dense<0xFF800000> : vector<8xf32>
    %16 = vector.multi_reduction <maximumf>, %15, %cst_5 [1] : vector<8x16xf32> to vector<8xf32>
    %17 = vector.shape_cast %16 : vector<8xf32> to vector<8x1xf32>
    %18 = vector.broadcast %17 : vector<8x1xf32> to vector<8x16xf32>
    %19 = arith.subf %15, %18 : vector<8x16xf32>
    %20 = math.exp %19 : vector<8x16xf32>
    %cst_6 = arith.constant dense<0.000000e+00> : vector<8xf32>
    %21 = vector.multi_reduction <add>, %20, %cst_6 [1] : vector<8x16xf32> to vector<8xf32>
    %22 = vector.shape_cast %21 : vector<8xf32> to vector<8x1xf32>
    %23 = tpu.reciprocal %22 {approx = true} : vector<8x1xf32> -> vector<8x1xf32>
    %24 = vector.broadcast %23 : vector<8x1xf32> to vector<8x16xf32>
    %25 = arith.mulf %20, %24 : vector<8x16xf32>
    %cst_7 = arith.constant dense<0.000000e+00> : vector<8x32xf32>
    %26 = tpu.matmul %25, %14, %cst_7 {dimension_numbers = #tpu.dot_dimension_numbers<[1], [0], [0], [1], [0, 0, 1, 1], [], []>} : vector<8x16xf32>, vector<16x32xf32>, vector<8x32xf32> -> vector<8x32xf32>
    %c0_8 = arith.constant 0 : index
    %c0_9 = arith.constant 0 : index
    %27 = vector.load %arg12[%c0_8, %c0_9] : memref<8x128xf32, #tpu.memory_space<vmem>>, vector<8x32xf32>
    tpu.vector_store %arg12[%c0_8, %c0_9], %26 {strides = array<i32>} : memref<8x128xf32, #tpu.memory_space<vmem>>, vector<8x32xf32>,
    %28 = vector.extract_strided_slice %9 {offsets = [0, 32], sizes = [8, 32], strides = [1, 1]} : vector<8x128xf32> to vector<8x32xf32>
    %29 = vector.extract_strided_slice %10 {offsets = [0, 32], sizes = [16, 32], strides = [1, 1]} : vector<16x128xf32> to vector<16x32xf32>
    %30 = vector.extract_strided_slice %11 {offsets = [0, 32], sizes = [16, 32], strides = [1, 1]} : vector<16x128xf32> to vector<16x32xf32>
    %cst_10 = arith.constant dense<0.000000e+00> : vector<8x16xf32>
    %31 = tpu.matmul %28, %29, %cst_10 {dimension_numbers = #tpu.dot_dimension_numbers<[1], [1], [0], [0], [0, 0, 1, 0], [], []>} : vector<8x32xf32>, vector<16x32xf32>, vector<8x16xf32> -> vector<8x16xf32>
    %cst_11 = arith.constant dense<0xFF800000> : vector<8xf32>
    %32 = vector.multi_reduction <maximumf>, %31, %cst_11 [1] : vector<8x16xf32> to vector<8xf32>
    %33 = vector.shape_cast %32 : vector<8xf32> to vector<8x1xf32>
    %34 = vector.broadcast %33 : vector<8x1xf32> to vector<8x16xf32>
    %35 = arith.subf %31, %34 : vector<8x16xf32>
    %36 = math.exp %35 : vector<8x16xf32>
    %cst_12 = arith.constant dense<0.000000e+00> : vector<8xf32>
    %37 = vector.multi_reduction <add>, %36, %cst_12 [1] : vector<8x16xf32> to vector<8xf32>
    %38 = vector.shape_cast %37 : vector<8xf32> to vector<8x1xf32>
    %39 = tpu.reciprocal %38 {approx = true} : vector<8x1xf32> -> vector<8x1xf32>
    %40 = vector.broadcast %39 : vector<8x1xf32> to vector<8x16xf32>
    %41 = arith.mulf %36, %40 : vector<8x16xf32>
    %cst_13 = arith.constant dense<0.000000e+00> : vector<8x32xf32>
    %42 = tpu.matmul %41, %30, %cst_13 {dimension_numbers = #tpu.dot_dimension_numbers<[1], [0], [0], [1], [0, 0, 1, 1], [], []>} : vector<8x16xf32>, vector<16x32xf32>, vector<8x32xf32> -> vector<8x32xf32>
    %c0_14 = arith.constant 0 : index
    %c32 = arith.constant 32 : index
    %43 = vector.load %arg12[%c0_14, %c32] : memref<8x128xf32, #tpu.memory_space<vmem>>, vector<8x32xf32>
    tpu.vector_store %arg12[%c0_14, %c32], %42 {strides = array<i32>} : memref<8x128xf32, #tpu.memory_space<vmem>>, vector<8x32xf32>,
    %44 = vector.extract_strided_slice %9 {offsets = [0, 64], sizes = [8, 32], strides = [1, 1]} : vector<8x128xf32> to vector<8x32xf32>
    %45 = vector.extract_strided_slice %10 {offsets = [0, 64], sizes = [16, 32], strides = [1, 1]} : vector<16x128xf32> to vector<16x32xf32>
    %46 = vector.extract_strided_slice %11 {offsets = [0, 64], sizes = [16, 32], strides = [1, 1]} : vector<16x128xf32> to vector<16x32xf32>
    %cst_15 = arith.constant dense<0.000000e+00> : vector<8x16xf32>
    %47 = tpu.matmul %44, %45, %cst_15 {dimension_numbers = #tpu.dot_dimension_numbers<[1], [1], [0], [0], [0, 0, 1, 0], [], []>} : vector<8x32xf32>, vector<16x32xf32>, vector<8x16xf32> -> vector<8x16xf32>
    %cst_16 = arith.constant dense<0xFF800000> : vector<8xf32>
    %48 = vector.multi_reduction <maximumf>, %47, %cst_16 [1] : vector<8x16xf32> to vector<8xf32>
    %49 = vector.shape_cast %48 : vector<8xf32> to vector<8x1xf32>
    %50 = vector.broadcast %49 : vector<8x1xf32> to vector<8x16xf32>
    %51 = arith.subf %47, %50 : vector<8x16xf32>
    %52 = math.exp %51 : vector<8x16xf32>
    %cst_17 = arith.constant dense<0.000000e+00> : vector<8xf32>
    %53 = vector.multi_reduction <add>, %52, %cst_17 [1] : vector<8x16xf32> to vector<8xf32>
    %54 = vector.shape_cast %53 : vector<8xf32> to vector<8x1xf32>
    %55 = tpu.reciprocal %54 {approx = true} : vector<8x1xf32> -> vector<8x1xf32>
    %56 = vector.broadcast %55 : vector<8x1xf32> to vector<8x16xf32>
    %57 = arith.mulf %52, %56 : vector<8x16xf32>
    %cst_18 = arith.constant dense<0.000000e+00> : vector<8x32xf32>
    %58 = tpu.matmul %57, %46, %cst_18 {dimension_numbers = #tpu.dot_dimension_numbers<[1], [0], [0], [1], [0, 0, 1, 1], [], []>} : vector<8x16xf32>, vector<16x32xf32>, vector<8x32xf32> -> vector<8x32xf32>
    %c0_19 = arith.constant 0 : index
    %c64 = arith.constant 64 : index
    %59 = vector.load %arg12[%c0_19, %c64] : memref<8x128xf32, #tpu.memory_space<vmem>>, vector<8x32xf32>
    tpu.vector_store %arg12[%c0_19, %c64], %58 {strides = array<i32>} : memref<8x128xf32, #tpu.memory_space<vmem>>, vector<8x32xf32>,
    %60 = vector.extract_strided_slice %9 {offsets = [0, 96], sizes = [8, 32], strides = [1, 1]} : vector<8x128xf32> to vector<8x32xf32>
    %61 = vector.extract_strided_slice %10 {offsets = [0, 96], sizes = [16, 32], strides = [1, 1]} : vector<16x128xf32> to vector<16x32xf32>
    %62 = vector.extract_strided_slice %11 {offsets = [0, 96], sizes = [16, 32], strides = [1, 1]} : vector<16x128xf32> to vector<16x32xf32>
    %cst_20 = arith.constant dense<0.000000e+00> : vector<8x16xf32>
    %63 = tpu.matmul %60, %61, %cst_20 {dimension_numbers = #tpu.dot_dimension_numbers<[1], [1], [0], [0], [0, 0, 1, 0], [], []>} : vector<8x32xf32>, vector<16x32xf32>, vector<8x16xf32> -> vector<8x16xf32>
    %cst_21 = arith.constant dense<0xFF800000> : vector<8xf32>
    %64 = vector.multi_reduction <maximumf>, %63, %cst_21 [1] : vector<8x16xf32> to vector<8xf32>
    %65 = vector.shape_cast %64 : vector<8xf32> to vector<8x1xf32>
    %66 = vector.broadcast %65 : vector<8x1xf32> to vector<8x16xf32>
    %67 = arith.subf %63, %66 : vector<8x16xf32>
    %68 = math.exp %67 : vector<8x16xf32>
    %cst_22 = arith.constant dense<0.000000e+00> : vector<8xf32>
    %69 = vector.multi_reduction <add>, %68, %cst_22 [1] : vector<8x16xf32> to vector<8xf32>
    %70 = vector.shape_cast %69 : vector<8xf32> to vector<8x1xf32>
    %71 = tpu.reciprocal %70 {approx = true} : vector<8x1xf32> -> vector<8x1xf32>
    %72 = vector.broadcast %71 : vector<8x1xf32> to vector<8x16xf32>
    %73 = arith.mulf %68, %72 : vector<8x16xf32>
    %cst_23 = arith.constant dense<0.000000e+00> : vector<8x32xf32>
    %74 = tpu.matmul %73, %62, %cst_23 {dimension_numbers = #tpu.dot_dimension_numbers<[1], [0], [0], [1], [0, 0, 1, 1], [], []>} : vector<8x16xf32>, vector<16x32xf32>, vector<8x32xf32> -> vector<8x32xf32>
    %c0_24 = arith.constant 0 : index
    %c96 = arith.constant 96 : index
    %75 = vector.load %arg12[%c0_24, %c96] : memref<8x128xf32, #tpu.memory_space<vmem>>, vector<8x32xf32>
    tpu.vector_store %arg12[%c0_24, %c96], %74 {strides = array<i32>} : memref<8x128xf32, #tpu.memory_space<vmem>>, vector<8x32xf32>,
    %c0_25 = arith.constant 0 : index
    %c0_26 = arith.constant 0 : index
    %76 = vector.load %arg9[%c0_25, %c0_26] : memref<6x128xf32, #tpu.memory_space<vmem>>, vector<6x128xf32>
    %77 = vector.extract_strided_slice %76 {offsets = [0, 0], sizes = [1, 128], strides = [1, 1]} : vector<6x128xf32> to vector<1x128xf32>
    %78 = vector.extract_strided_slice %76 {offsets = [1, 0], sizes = [1, 128], strides = [1, 1]} : vector<6x128xf32> to vector<1x128xf32>
    %79 = vector.extract_strided_slice %76 {offsets = [2, 0], sizes = [1, 128], strides = [1, 1]} : vector<6x128xf32> to vector<1x128xf32>
    %80 = vector.extract_strided_slice %76 {offsets = [3, 0], sizes = [1, 128], strides = [1, 1]} : vector<6x128xf32> to vector<1x128xf32>
    %81 = vector.extract_strided_slice %76 {offsets = [4, 0], sizes = [1, 128], strides = [1, 1]} : vector<6x128xf32> to vector<1x128xf32>
    %82 = vector.extract_strided_slice %76 {offsets = [5, 0], sizes = [1, 128], strides = [1, 1]} : vector<6x128xf32> to vector<1x128xf32>
    %c0_27 = arith.constant 0 : index
    %c0_28 = arith.constant 0 : index
    %83 = vector.load %arg12[%c0_27, %c0_28] : memref<8x128xf32, #tpu.memory_space<vmem>>, vector<8x128xf32>
    %c0_29 = arith.constant 0 : index
    %c0_30 = arith.constant 0 : index
    %84 = vector.load %arg5[%c0_29, %c0_30] : memref<128x128xf32, #tpu.memory_space<vmem>>, vector<128x128xf32>
    %cst_31 = arith.constant dense<0.000000e+00> : vector<8x128xf32>
    %85 = tpu.matmul %83, %84, %cst_31 {dimension_numbers = #tpu.dot_dimension_numbers<[1], [0], [0], [1], [0, 0, 1, 1], [], []>} : vector<8x128xf32>, vector<128x128xf32>, vector<8x128xf32> -> vector<8x128xf32>
    %86 = vector.broadcast %77 : vector<1x128xf32> to vector<8x128xf32>
    %87 = arith.addf %85, %86 : vector<8x128xf32>
    %88 = arith.addf %7, %87 : vector<8x128xf32>
    %cst_32 = arith.constant dense<0.000000e+00> : vector<8xf32>
    %89 = vector.multi_reduction <add>, %88, %cst_32 [1] : vector<8x128xf32> to vector<8xf32>
    %90 = vector.shape_cast %89 : vector<8xf32> to vector<8x1xf32>
    %cst_33 = arith.constant 7.812500e-03 : f32
    %91 = vector.broadcast %cst_33 : f32 to vector<8x1xf32>
    %92 = arith.mulf %90, %91 : vector<8x1xf32>
    %93 = arith.mulf %88, %88 : vector<8x128xf32>
    %cst_34 = arith.constant dense<0.000000e+00> : vector<8xf32>
    %94 = vector.multi_reduction <add>, %93, %cst_34 [1] : vector<8x128xf32> to vector<8xf32>
    %95 = vector.shape_cast %94 : vector<8xf32> to vector<8x1xf32>
    %cst_35 = arith.constant 7.812500e-03 : f32
    %96 = vector.broadcast %cst_35 : f32 to vector<8x1xf32>
    %97 = arith.mulf %95, %96 : vector<8x1xf32>
    %98 = arith.mulf %92, %92 : vector<8x1xf32>
    %99 = arith.subf %97, %98 : vector<8x1xf32>
    %100 = vector.broadcast %92 : vector<8x1xf32> to vector<8x128xf32>
    %101 = arith.subf %88, %100 : vector<8x128xf32>
    %cst_36 = arith.constant 9.99999974E-6 : f32
    %102 = vector.broadcast %cst_36 : f32 to vector<8x1xf32>
    %103 = arith.addf %99, %102 : vector<8x1xf32>
    %104 = math.rsqrt %103 : vector<8x1xf32>
    %105 = vector.broadcast %104 : vector<8x1xf32> to vector<8x128xf32>
    %106 = arith.mulf %101, %105 : vector<8x128xf32>
    %107 = vector.broadcast %78 : vector<1x128xf32> to vector<8x128xf32>
    %108 = arith.mulf %106, %107 : vector<8x128xf32>
    %109 = vector.broadcast %79 : vector<1x128xf32> to vector<8x128xf32>
    %110 = arith.addf %108, %109 : vector<8x128xf32>
    %c0_37 = arith.constant 0 : index
    %c0_38 = arith.constant 0 : index
    %111 = vector.load %arg6[%c0_37, %c0_38] : memref<128x256xf32, #tpu.memory_space<vmem>>, vector<128x256xf32>
    %cst_39 = arith.constant dense<0.000000e+00> : vector<8x256xf32>
    %112 = tpu.matmul %110, %111, %cst_39 {dimension_numbers = #tpu.dot_dimension_numbers<[1], [0], [0], [1], [0, 0, 1, 1], [], []>} : vector<8x128xf32>, vector<128x256xf32>, vector<8x256xf32> -> vector<8x256xf32>
    %c0_40 = arith.constant 0 : index
    %c0_41 = arith.constant 0 : index
    %113 = vector.load %arg7[%c0_40, %c0_41] : memref<1x256xf32, #tpu.memory_space<vmem>>, vector<1x256xf32>
    %114 = vector.shape_cast %113 : vector<1x256xf32> to vector<256xf32>
    %115 = vector.shape_cast %114 : vector<256xf32> to vector<1x256xf32>
    %116 = vector.broadcast %115 : vector<1x256xf32> to vector<8x256xf32>
    %117 = arith.addf %112, %116 : vector<8x256xf32>
    %cst_42 = arith.constant 0.000000e+00 : f32
    %118 = vector.broadcast %cst_42 : f32 to vector<8x256xf32>
    %119 = arith.maximumf %117, %118 : vector<8x256xf32>
    %c0_43 = arith.constant 0 : index
    %c0_44 = arith.constant 0 : index
    %120 = vector.load %arg8[%c0_43, %c0_44] : memref<256x128xf32, #tpu.memory_space<vmem>>, vector<256x128xf32>
    %cst_45 = arith.constant dense<0.000000e+00> : vector<8x128xf32>
    %121 = tpu.matmul %119, %120, %cst_45 {dimension_numbers = #tpu.dot_dimension_numbers<[1], [0], [0], [1], [0, 0, 1, 1], [], []>} : vector<8x256xf32>, vector<256x128xf32>, vector<8x128xf32> -> vector<8x128xf32>
    %122 = vector.broadcast %80 : vector<1x128xf32> to vector<8x128xf32>
    %123 = arith.addf %121, %122 : vector<8x128xf32>
    %124 = arith.addf %110, %123 : vector<8x128xf32>
    %cst_46 = arith.constant dense<0.000000e+00> : vector<8xf32>
    %125 = vector.multi_reduction <add>, %124, %cst_46 [1] : vector<8x128xf32> to vector<8xf32>
    %126 = vector.shape_cast %125 : vector<8xf32> to vector<8x1xf32>
    %cst_47 = arith.constant 7.812500e-03 : f32
    %127 = vector.broadcast %cst_47 : f32 to vector<8x1xf32>
    %128 = arith.mulf %126, %127 : vector<8x1xf32>
    %129 = arith.mulf %124, %124 : vector<8x128xf32>
    %cst_48 = arith.constant dense<0.000000e+00> : vector<8xf32>
    %130 = vector.multi_reduction <add>, %129, %cst_48 [1] : vector<8x128xf32> to vector<8xf32>
    %131 = vector.shape_cast %130 : vector<8xf32> to vector<8x1xf32>
    %cst_49 = arith.constant 7.812500e-03 : f32
    %132 = vector.broadcast %cst_49 : f32 to vector<8x1xf32>
    %133 = arith.mulf %131, %132 : vector<8x1xf32>
    %134 = arith.mulf %128, %128 : vector<8x1xf32>
    %135 = arith.subf %133, %134 : vector<8x1xf32>
    %136 = vector.broadcast %128 : vector<8x1xf32> to vector<8x128xf32>
    %137 = arith.subf %124, %136 : vector<8x128xf32>
    %cst_50 = arith.constant 9.99999974E-6 : f32
    %138 = vector.broadcast %cst_50 : f32 to vector<8x1xf32>
    %139 = arith.addf %135, %138 : vector<8x1xf32>
    %140 = math.rsqrt %139 : vector<8x1xf32>
    %141 = vector.broadcast %140 : vector<8x1xf32> to vector<8x128xf32>
    %142 = arith.mulf %137, %141 : vector<8x128xf32>
    %143 = vector.broadcast %81 : vector<1x128xf32> to vector<8x128xf32>
    %144 = arith.mulf %142, %143 : vector<8x128xf32>
    %145 = vector.broadcast %82 : vector<1x128xf32> to vector<8x128xf32>
    %146 = arith.addf %144, %145 : vector<8x128xf32>
    %c0_51 = arith.constant 0 : index
    %c0_52 = arith.constant 0 : index
    %c0_53 = arith.constant 0 : index
    %147 = vector.load %arg10[%c0_51, %c0_52, %c0_53] : memref<1x8x128xf32, #tpu.memory_space<vmem>>, vector<1x8x128xf32>
    %148 = vector.shape_cast %147 : vector<1x8x128xf32> to vector<8x128xf32>
    %149 = vector.shape_cast %146 : vector<8x128xf32> to vector<1x8x128xf32>
    tpu.vector_store %arg10[%c0_51, %c0_52, %c0_53], %149 {strides = array<i32>} : memref<1x8x128xf32, #tpu.memory_space<vmem>>, vector<1x8x128xf32>,
    return
  }
  func.func @transform_0(%arg0: i32, %arg1: i32) -> (i32, i32, i32) {
    %c0_i32 = arith.constant 0 : i32
    %c0_i32_0 = arith.constant 0 : i32
    %c0_i32_1 = arith.constant 0 : i32
    return %arg0, %c0_i32, %c0_i32_0 : i32, i32, i32
  }
  func.func @transform_1(%arg0: i32, %arg1: i32) -> (i32, i32) {
    %c0_i32 = arith.constant 0 : i32
    %c0_i32_0 = arith.constant 0 : i32
    %c0_i32_1 = arith.constant 0 : i32
    return %c0_i32, %c0_i32_0 : i32, i32
  }
  func.func @transform_2(%arg0: i32, %arg1: i32) -> (i32, i32) {
    %c0_i32 = arith.constant 0 : i32
    %c0_i32_0 = arith.constant 0 : i32
    %c0_i32_1 = arith.constant 0 : i32
    return %c0_i32, %c0_i32_0 : i32, i32
  }
  func.func @transform_3(%arg0: i32, %arg1: i32) -> (i32, i32) {
    %c0_i32 = arith.constant 0 : i32
    %c0_i32_0 = arith.constant 0 : i32
    %c0_i32_1 = arith.constant 0 : i32
    return %c0_i32, %c0_i32_0 : i32, i32
  }
  func.func @transform_4(%arg0: i32, %arg1: i32) -> (i32, i32) {
    %c0_i32 = arith.constant 0 : i32
    %c0_i32_0 = arith.constant 0 : i32
    %c0_i32_1 = arith.constant 0 : i32
    return %c0_i32, %c0_i32_0 : i32, i32
  }
  func.func @transform_5(%arg0: i32, %arg1: i32) -> (i32, i32) {
    %c0_i32 = arith.constant 0 : i32
    %c0_i32_0 = arith.constant 0 : i32
    %c0_i32_1 = arith.constant 0 : i32
    return %c0_i32, %c0_i32_0 : i32, i32
  }
  func.func @transform_6(%arg0: i32, %arg1: i32) -> (i32, i32) {
    %c0_i32 = arith.constant 0 : i32
    %c0_i32_0 = arith.constant 0 : i32
    %c0_i32_1 = arith.constant 0 : i32
    return %c0_i32, %c0_i32_0 : i32, i32
  }
  func.func @transform_7(%arg0: i32, %arg1: i32) -> (i32, i32) {
    %c0_i32 = arith.constant 0 : i32
    %c0_i32_0 = arith.constant 0 : i32
    %c0_i32_1 = arith.constant 0 : i32
    return %c0_i32, %c0_i32_0 : i32, i32
  }
  func.func @transform_8(%arg0: i32, %arg1: i32) -> (i32, i32, i32) {
    %c0_i32 = arith.constant 0 : i32
    %c0_i32_0 = arith.constant 0 : i32
    return %arg0, %arg1, %c0_i32 : i32, i32, i32
  }
}

</mosaic_0001>

<llo_original>
// kernel: tpu_custom_call.1
$region0: #{tpu_custom_call.1}
  #allocation0 [shape = 'u32[]', space=smem, size = 0x4, offset = 0x4, fixed_abs, tag = 'smem constant byte address 0x4 - core index']
  #allocation1 [shape = 'u32[144,128]{1,0:T(1,128)}', space=vmem, size = 0x12000, scoped, tag = 'internal scratch']
  #allocation2 [shape = 'f32[16,384]{1,0:T(8,128)}', space=vmem, size = 0x6000, scoped, tag = 'scratch operand']
  #allocation3 [shape = 'f32[8,128]{1,0:T(8,128)}', space=vmem, size = 0x1000, scoped, tag = 'scratch operand']
  %s0 = inlined_call_operand.hbm [shape: f32[2,16,128], index: 0, kind: input, shape index: {}]
  %s1 = inlined_call_operand.hbm [shape: f32[128,384], index: 1, kind: input, shape index: {}]
  %s2 = inlined_call_operand.vmem [shape: f32[1,384], index: 2, kind: input, shape index: {}]
  %s3 = inlined_call_operand.hbm [shape: f32[128,128], index: 3, kind: input, shape index: {}]
  %s4 = inlined_call_operand.hbm [shape: f32[128,256], index: 4, kind: input, shape index: {}]
  %s5 = inlined_call_operand.vmem [shape: f32[1,256], index: 5, kind: input, shape index: {}]
  %s6 = inlined_call_operand.hbm [shape: f32[256,128], index: 6, kind: input, shape index: {}]
  %s7 = inlined_call_operand.vmem [shape: f32[6,128], index: 7, kind: input, shape index: {}]
  %s8 = inlined_call_operand.hbm [shape: f32[2,16,128], index: 8, kind: output, shape index: {}]
  %s9 = sld [smem:[#allocation0]]
  $region89: #{tpu_custom_call.1} parent=0
    _
  %s11 = ssub.s32 1, %s9
  %s12 = scalar_select 0, %s11, %s9
  $region1: #{tpu_custom_call.1} parent=0
    #allocation4 [shape = 'u8[16384]{0}', space=vmem, size = 0x4000, scoped, tag = 'input window, operand 0']
    #allocation5 [shape = 's32[2]{0}', space=sflag, size = 0x8, scoped, tag = 'scoped memory for tpu_custom_call.1']
    #allocation6 [shape = 's32[2]{0}', space=sflag, size = 0x8, scoped, tag = 'scoped memory for tpu_custom_call.1']
    #allocation7 [shape = 'u8[196608]{0}', space=vmem, size = 0x30000, scoped, tag = 'input window, operand 1, single buffered']
    #allocation8 [shape = 's32[1]{0}', space=sflag, size = 0x4, scoped, tag = 'scoped memory for tpu_custom_call.1']
    #allocation9 [shape = 'u8[65536]{0}', space=vmem, size = 0x10000, scoped, tag = 'input window, operand 3, single buffered']
    #allocation10 [shape = 'u8[131072]{0}', space=vmem, size = 0x20000, scoped, tag = 'input window, operand 4, single buffered']
    #allocation11 [shape = 's32[1]{0}', space=sflag, size = 0x4, scoped, tag = 'scoped memory for tpu_custom_call.1']
    #allocation12 [shape = 'u8[131072]{0}', space=vmem, size = 0x20000, scoped, tag = 'input window, operand 6, single buffered']
    #allocation13 [shape = 'u8[8192]{0}', space=vmem, size = 0x2000, scoped, tag = 'output window, operand 0']
    %13 = vsyncpa [#allocation5], 0
    %s14 = scalar_lea.sflag [#allocation5], 1
    %15 = vsyncpa %s14, 0
    %16 = vsyncpa [#allocation8], 0
    %17 = vsyncpa [#allocation11], 0
    %18 = vsyncpa [#allocation6], 0
    %s19 = scalar_lea.sflag [#allocation6], 1
    %20 = vsyncpa %s19, 0
    loop: start=0, step=1, limit=6
    $region2: #{tpu_custom_call.1} parent=1 // loop_pre_header
      _
    $region3: #{tpu_custom_call.1} parent=1 // loop_header
      %s22 = sphi 0, %s26
      %p23 = scmp.ge.s32.totalorder %s22, 6
      %s29 = sphi 0, %s41
      %s30 = sphi 0, %s37
      %s31 = sphi 0, %s29
      %s32 = sphi 0, %s30
      %s33 = sphi 0, %s31
      %s34 = sphi 0, %s32
      %s44 = sphi 0, %s46
      %s47 = sphi 0, %s44
      %s48 = sphi 0, %s47
      %s64 = sphi 0, %s48
      %s68 = sphi 0, %s68
      %s70 = sphi 0, %s68
      %s71 = sphi 0, %s70
      %s85 = sphi 0, %s71
      %s89 = sphi 0, %s89
      %s91 = sphi 0, %s89
      %s92 = sphi 0, %s91
      %s106 = sphi 0, %s92
      %s110 = sphi 0, %s110
      %s112 = sphi 0, %s110
      %s113 = sphi 0, %s112
      %s127 = sphi 0, %s113
      %s131 = sphi 0, %s131
      %s133 = sphi 0, %s131
      %s134 = sphi 0, %s133
      %s148 = sphi 0, %s134
      %s152 = sphi 0, %s152
      %s154 = sphi 0, %s152
      %s155 = sphi 0, %s154
      %s169 = sphi 0, %s155
      %s173 = sphi 0, %s173
      %s175 = sphi 0, %s173
      %s176 = sphi 0, %s175
      %s190 = sphi 0, %s176
      %s194 = sphi 0, %s194
      %s196 = sphi 0, %s194
      %s197 = sphi 0, %s196
      %s211 = sphi 0, %s197
      %s219 = sphi 0, %s221
      %s222 = sphi 0, %s219
      %s223 = sphi 0, %s222
      %s239 = sphi 0, %s223
    $region4: #{tpu_custom_call.1} parent=1 // loop_header_branch
      %25 = sbr.rel (%p23) target = $region8
    $region5: #{tpu_custom_call.1} parent=1 // loop_body
      %s27 = ssub.s32 %s22, 1
      %s28 = ssub.s32 %s22, 2
      %s35 = sadd.s32 1, %s30
      %p36 = scmp.ge.s32.totalorder %s35, 2
      %s37 = scalar_select %p36, 0, %s35
      %s38 = sadd.s32 1, %s29
      %s39 = scalar_select %p36, %s38, %s29
      %p40 = scmp.ge.s32.totalorder %s39, 2
      %s41 = scalar_select %p40, 0, %s39
      %s42 = ssub.s32 %s29, %s41
      %p43 = scmp.eq.s32.totalorder %s42, 0
      %s45 = sadd.s32 %s44, 1
      %s46 = scalar_select %p43, %s44, %s45
      %p49 = pneg %p43
      %p50 = scmp.eq.s32.totalorder %s22, 3
      %p51 = por %p49, %p50
      %p52 = scmp.ne.s32.totalorder %s44, %s47
      %p53 = scmp.eq.s32.totalorder %s22, 0
      %p54 = por %p52, %p53
      %p55 = scmp.ne.s32.totalorder %s44, %s47
      %p56 = scmp.eq.s32.totalorder %s27, 3
      %p57 = por %p55, %p56
      %p58 = scmp.ne.s32.totalorder %s47, %s48
      %p59 = scmp.eq.s32.totalorder %s27, 0
      %p60 = por %p58, %p59
      %p61 = scmp.ne.s32.totalorder %s47, %s48
      %p62 = scmp.eq.s32.totalorder %s28, 3
      %p63 = por %p61, %p62
      %p65 = scmp.ne.s32.totalorder %s48, %s64
      %p66 = scmp.eq.s32.totalorder %s28, 0
      %p67 = por %p65, %p66
      %s69 = sadd.s32 %s68, 1
      %p72 = scmp.eq.s32.totalorder %s22, 3
      %p73 = scmp.ne.s32.totalorder %s68, %s70
      %p74 = scmp.eq.s32.totalorder %s22, 0
      %p75 = por %p73, %p74
      %p76 = scmp.ne.s32.totalorder %s68, %s70
      %p77 = scmp.eq.s32.totalorder %s27, 3
      %p78 = por %p76, %p77
      %p79 = scmp.ne.s32.totalorder %s70, %s71
      %p80 = scmp.eq.s32.totalorder %s27, 0
      %p81 = por %p79, %p80
      %p82 = scmp.ne.s32.totalorder %s70, %s71
      %p83 = scmp.eq.s32.totalorder %s28, 3
      %p84 = por %p82, %p83
      %p86 = scmp.ne.s32.totalorder %s71, %s85
      %p87 = scmp.eq.s32.totalorder %s28, 0
      %p88 = por %p86, %p87
      %s90 = sadd.s32 %s89, 1
      %p93 = scmp.eq.s32.totalorder %s22, 3
      %p94 = scmp.ne.s32.totalorder %s89, %s91
      %p95 = scmp.eq.s32.totalorder %s22, 0
      %p96 = por %p94, %p95
      %p97 = scmp.ne.s32.totalorder %s89, %s91
      %p98 = scmp.eq.s32.totalorder %s27, 3
      %p99 = por %p97, %p98
      %p100 = scmp.ne.s32.totalorder %s91, %s92
      %p101 = scmp.eq.s32.totalorder %s27, 0
      %p102 = por %p100, %p101
      %p103 = scmp.ne.s32.totalorder %s91, %s92
      %p104 = scmp.eq.s32.totalorder %s28, 3
      %p105 = por %p103, %p104
      %p107 = scmp.ne.s32.totalorder %s92, %s106
      %p108 = scmp.eq.s32.totalorder %s28, 0
      %p109 = por %p107, %p108
      %s111 = sadd.s32 %s110, 1
      %p114 = scmp.eq.s32.totalorder %s22, 3
      %p115 = scmp.ne.s32.totalorder %s110, %s112
      %p116 = scmp.eq.s32.totalorder %s22, 0
      %p117 = por %p115, %p116
      %p118 = scmp.ne.s32.totalorder %s110, %s112
      %p119 = scmp.eq.s32.totalorder %s27, 3
      %p120 = por %p118, %p119
      %p121 = scmp.ne.s32.totalorder %s112, %s113
      %p122 = scmp.eq.s32.totalorder %s27, 0
      %p123 = por %p121, %p122
      %p124 = scmp.ne.s32.totalorder %s112, %s113
      %p125 = scmp.eq.s32.totalorder %s28, 3
      %p126 = por %p124, %p125
      %p128 = scmp.ne.s32.totalorder %s113, %s127
      %p129 = scmp.eq.s32.totalorder %s28, 0
      %p130 = por %p128, %p129
      %s132 = sadd.s32 %s131, 1
      %p135 = scmp.eq.s32.totalorder %s22, 3
      %p136 = scmp.ne.s32.totalorder %s131, %s133
      %p137 = scmp.eq.s32.totalorder %s22, 0
      %p138 = por %p136, %p137
      %p139 = scmp.ne.s32.totalorder %s131, %s133
      %p140 = scmp.eq.s32.totalorder %s27, 3
      %p141 = por %p139, %p140
      %p142 = scmp.ne.s32.totalorder %s133, %s134
      %p143 = scmp.eq.s32.totalorder %s27, 0
      %p144 = por %p142, %p143
      %p145 = scmp.ne.s32.totalorder %s133, %s134
      %p146 = scmp.eq.s32.totalorder %s28, 3
      %p147 = por %p145, %p146
      %p149 = scmp.ne.s32.totalorder %s134, %s148
      %p150 = scmp.eq.s32.totalorder %s28, 0
      %p151 = por %p149, %p150
      %s153 = sadd.s32 %s152, 1
      %p156 = scmp.eq.s32.totalorder %s22, 3
      %p157 = scmp.ne.s32.totalorder %s152, %s154
      %p158 = scmp.eq.s32.totalorder %s22, 0
      %p159 = por %p157, %p158
      %p160 = scmp.ne.s32.totalorder %s152, %s154
      %p161 = scmp.eq.s32.totalorder %s27, 3
      %p162 = por %p160, %p161
      %p163 = scmp.ne.s32.totalorder %s154, %s155
      %p164 = scmp.eq.s32.totalorder %s27, 0
      %p165 = por %p163, %p164
      %p166 = scmp.ne.s32.totalorder %s154, %s155
      %p167 = scmp.eq.s32.totalorder %s28, 3
      %p168 = por %p166, %p167
      %p170 = scmp.ne.s32.totalorder %s155, %s169
      %p171 = scmp.eq.s32.totalorder %s28, 0
      %p172 = por %p170, %p171
      %s174 = sadd.s32 %s173, 1
      %p177 = scmp.eq.s32.totalorder %s22, 3
      %p178 = scmp.ne.s32.totalorder %s173, %s175
      %p179 = scmp.eq.s32.totalorder %s22, 0
      %p180 = por %p178, %p179
      %p181 = scmp.ne.s32.totalorder %s173, %s175
      %p182 = scmp.eq.s32.totalorder %s27, 3
      %p183 = por %p181, %p182
      %p184 = scmp.ne.s32.totalorder %s175, %s176
      %p185 = scmp.eq.s32.totalorder %s27, 0
      %p186 = por %p184, %p185
      %p187 = scmp.ne.s32.totalorder %s175, %s176
      %p188 = scmp.eq.s32.totalorder %s28, 3
      %p189 = por %p187, %p188
      %p191 = scmp.ne.s32.totalorder %s176, %s190
      %p192 = scmp.eq.s32.totalorder %s28, 0
      %p193 = por %p191, %p192
      %s195 = sadd.s32 %s194, 1
      %p198 = scmp.eq.s32.totalorder %s22, 3
      %p199 = scmp.ne.s32.totalorder %s194, %s196
      %p200 = scmp.eq.s32.totalorder %s22, 0
      %p201 = por %p199, %p200
      %p202 = scmp.ne.s32.totalorder %s194, %s196
      %p203 = scmp.eq.s32.totalorder %s27, 3
      %p204 = por %p202, %p203
      %p205 = scmp.ne.s32.totalorder %s196, %s197
      %p206 = scmp.eq.s32.totalorder %s27, 0
      %p207 = por %p205, %p206
      %p208 = scmp.ne.s32.totalorder %s196, %s197
      %p209 = scmp.eq.s32.totalorder %s28, 3
      %p210 = por %p208, %p209
      %p212 = scmp.ne.s32.totalorder %s197, %s211
      %p213 = scmp.eq.s32.totalorder %s28, 0
      %p214 = por %p212, %p213
      %s215 = ssub.s32 %s29, %s41
      %s216 = ssub.s32 %s30, %s37
      %s217 = sor.u32 %s215, %s216
      %p218 = scmp.eq.s32.totalorder %s217, 0
      %s220 = sadd.s32 %s219, 1
      %s221 = scalar_select %p218, %s219, %s220
      %p224 = pneg %p218
      %p225 = scmp.eq.s32.totalorder %s22, 3
      %p226 = por %p224, %p225
      %p227 = scmp.ne.s32.totalorder %s219, %s222
      %p228 = scmp.eq.s32.totalorder %s22, 0
      %p229 = por %p227, %p228
      %p230 = scmp.ne.s32.totalorder %s219, %s222
      %p231 = scmp.eq.s32.totalorder %s27, 3
      %p232 = por %p230, %p231
      %p233 = scmp.ne.s32.totalorder %s222, %s223
      %p234 = scmp.eq.s32.totalorder %s27, 0
      %p235 = por %p233, %p234
      %p236 = scmp.ne.s32.totalorder %s222, %s223
      %p237 = scmp.eq.s32.totalorder %s28, 3
      %p238 = por %p236, %p237
      %p240 = scmp.ne.s32.totalorder %s223, %s239
      %p241 = scmp.eq.s32.totalorder %s28, 0
      %p242 = por %p240, %p241
      %p243 = scmp.le.s32.totalorder 1, %s22
      %p244 = scmp.lt.s32.totalorder %s22, 5
      %p245 = pnand %p243, %p244
      %p246 = pneg %p245
      // Predicated region
      $region9: #{tpu_custom_call.1} parent=5 // pred_check
        _
      $region10: #{tpu_custom_call.1} parent=5 // pred_check_branch
        %248 = sbr.rel (%p245) target = $region12
      $region11: #{tpu_custom_call.1} parent=5 // pred_region
        %s249 = ssub.s32 %s22, 1
        // Predicated region
        $region13: #{tpu_custom_call.1} parent=11 // pred_check
          %p250 = pneg %p81
        $region14: #{tpu_custom_call.1} parent=11 // pred_check_branch
          %252 = sbr.rel (%p250) target = $region16
        $region15: #{tpu_custom_call.1} parent=11 // pred_region
          %s254 = ssub.s32 6144, 6144
          %255 = vsyncadd [#allocation8], %s254
          %s256 = sshll.u32 [#allocation7], 4
          %s257 = int_to_ptr.vmem [resolvable:$true] %s256
          %262 = dma.hbm_to_vmem [thread:$0]  %s1, 6144, %s257, [#allocation8], 384, 384, 24
        $region16: #{tpu_custom_call.1} parent=11 // pred_fallthru
          _
        // Predicated region
        $region17: #{tpu_custom_call.1} parent=11 // pred_check
          %p263 = pneg %p102
        $region18: #{tpu_custom_call.1} parent=11 // pred_check_branch
          %265 = sbr.rel (%p263) target = $region20
        $region19: #{tpu_custom_call.1} parent=11 // pred_region
          _
        $region20: #{tpu_custom_call.1} parent=11 // pred_fallthru
          _
        // Predicated region
        $region21: #{tpu_custom_call.1} parent=11 // pred_check
          %p266 = pneg %p123
        $region22: #{tpu_custom_call.1} parent=11 // pred_check_branch
          %268 = sbr.rel (%p266) target = $region24
        $region23: #{tpu_custom_call.1} parent=11 // pred_region
          %s270 = ssub.s32 2048, 2048
          %271 = vsyncadd [#allocation8], %s270
          %s272 = sshll.u32 [#allocation9], 4
          %s273 = int_to_ptr.vmem [resolvable:$true] %s272
          %278 = dma.hbm_to_vmem [thread:$0]  %s3, 2048, %s273, [#allocation8], 128, 128, 8
        $region24: #{tpu_custom_call.1} parent=11 // pred_fallthru
          _
        // Predicated region
        $region25: #{tpu_custom_call.1} parent=11 // pred_check
          %p279 = pneg %p144
        $region26: #{tpu_custom_call.1} parent=11 // pred_check_branch
          %281 = sbr.rel (%p279) target = $region28
        $region27: #{tpu_custom_call.1} parent=11 // pred_region
          %s283 = ssub.s32 4096, 4096
          %284 = vsyncadd [#allocation11], %s283
          %s285 = sshll.u32 [#allocation10], 4
          %s286 = int_to_ptr.vmem [resolvable:$true] %s285
          %291 = dma.hbm_to_vmem [thread:$0]  %s4, 4096, %s286, [#allocation11], 256, 256, 16
        $region28: #{tpu_custom_call.1} parent=11 // pred_fallthru
          _
        // Predicated region
        $region29: #{tpu_custom_call.1} parent=11 // pred_check
          %p292 = pneg %p165
        $region30: #{tpu_custom_call.1} parent=11 // pred_check_branch
          %294 = sbr.rel (%p292) target = $region32
        $region31: #{tpu_custom_call.1} parent=11 // pred_region
          _
        $region32: #{tpu_custom_call.1} parent=11 // pred_fallthru
          _
        // Predicated region
        $region33: #{tpu_custom_call.1} parent=11 // pred_check
          %p295 = pneg %p186
        $region34: #{tpu_custom_call.1} parent=11 // pred_check_branch
          %297 = sbr.rel (%p295) target = $region36
        $region35: #{tpu_custom_call.1} parent=11 // pred_region
          %s299 = ssub.s32 4096, 4096
          %300 = vsyncadd [#allocation11], %s299
          %s301 = sshll.u32 [#allocation12], 4
          %s302 = int_to_ptr.vmem [resolvable:$true] %s301
          %307 = dma.hbm_to_vmem [thread:$0]  %s6, 4096, %s302, [#allocation11], 128, 128, 8
        $region36: #{tpu_custom_call.1} parent=11 // pred_fallthru
          _
        // Predicated region
        $region37: #{tpu_custom_call.1} parent=11 // pred_check
          %p308 = pneg %p207
        $region38: #{tpu_custom_call.1} parent=11 // pred_check_branch
          %310 = sbr.rel (%p308) target = $region40
        $region39: #{tpu_custom_call.1} parent=11 // pred_region
          _
        $region40: #{tpu_custom_call.1} parent=11 // pred_fallthru
          _
      $region12: #{tpu_custom_call.1} parent=5 // pred_fallthru
        _
      %p311 = scmp.lt.s32.totalorder %s22, 4
      // Predicated region
      $region41: #{tpu_custom_call.1} parent=5 // pred_check
        %p312 = pneg %p311
      $region42: #{tpu_custom_call.1} parent=5 // pred_check_branch
        %314 = sbr.rel (%p312) target = $region44
      $region43: #{tpu_custom_call.1} parent=5 // pred_region
        // Predicated region
        $region45: #{tpu_custom_call.1} parent=43 // pred_check
          %p315 = pneg %p54
        $region46: #{tpu_custom_call.1} parent=43 // pred_check_branch
          %317 = sbr.rel (%p315) target = $region48
        $region47: #{tpu_custom_call.1} parent=43 // pred_region
          %s318 = sand.u32 %s44, 1
          %s319 = scalar_lea.sflag [#allocation5], %s318
          %s320 = sand.u32 %s44, 1
          %s321 = smul.addr %s320, 16
          %s322 = scalar_lea.vmem [#allocation4], %s321
          %s324 = ssub.s32 256, 256
          %325 = vsyncadd %s319, %s324
          %s326 = smul.addr %s29, 2
          %s327 = smul.addr %s326, 128
          %s328 = scalar_lea.hbm %s0, %s327
          %s329 = sshll.u32 %s322, 4
          %s330 = int_to_ptr.vmem [resolvable:$true] %s329
          %335 = dma.hbm_to_vmem [thread:$0]  %s328, 256, %s330, %s319, 128, 128, 8
        $region48: #{tpu_custom_call.1} parent=43 // pred_fallthru
          _
      $region44: #{tpu_custom_call.1} parent=5 // pred_fallthru
        _
      %p336 = scmp.le.s32.totalorder 1, %s22
      %p337 = scmp.lt.s32.totalorder %s22, 5
      %p338 = pnand %p336, %p337
      %p339 = pneg %p338
      // Predicated region
      $region49: #{tpu_custom_call.1} parent=5 // pred_check
        _
      $region50: #{tpu_custom_call.1} parent=5 // pred_check_branch
        %341 = sbr.rel (%p338) target = $region52
      $region51: #{tpu_custom_call.1} parent=5 // pred_region
        %s342 = ssub.s32 %s22, 1
        %s343 = sand.u32 %s47, 1
        %s344 = scalar_lea.sflag [#allocation5], %s343
        %s345 = sand.u32 %s47, 1
        %s346 = smul.addr %s345, 16
        %s347 = scalar_lea.vmem [#allocation4], %s346
        // Predicated region
        $region53: #{tpu_custom_call.1} parent=51 // pred_check
          %p348 = pneg %p60
        $region54: #{tpu_custom_call.1} parent=51 // pred_check_branch
          %350 = sbr.rel (%p348) target = $region56
        $region55: #{tpu_custom_call.1} parent=51 // pred_region
          %351 = dma.done %s344, 256
        $region56: #{tpu_custom_call.1} parent=51 // pred_fallthru
          _
        // Predicated region
        $region57: #{tpu_custom_call.1} parent=51 // pred_check
          %p352 = pneg %p81
        $region58: #{tpu_custom_call.1} parent=51 // pred_check_branch
          %354 = sbr.rel (%p352) target = $region60
        $region59: #{tpu_custom_call.1} parent=51 // pred_region
          %355 = dma.done [#allocation8], 6144
        $region60: #{tpu_custom_call.1} parent=51 // pred_fallthru
          _
        // Predicated region
        $region61: #{tpu_custom_call.1} parent=51 // pred_check
          %p356 = pneg %p123
        $region62: #{tpu_custom_call.1} parent=51 // pred_check_branch
          %358 = sbr.rel (%p356) target = $region64
        $region63: #{tpu_custom_call.1} parent=51 // pred_region
          %359 = dma.done [#allocation8], 2048
        $region64: #{tpu_custom_call.1} parent=51 // pred_fallthru
          _
        // Predicated region
        $region65: #{tpu_custom_call.1} parent=51 // pred_check
          %p360 = pneg %p144
        $region66: #{tpu_custom_call.1} parent=51 // pred_check_branch
          %362 = sbr.rel (%p360) target = $region68
        $region67: #{tpu_custom_call.1} parent=51 // pred_region
          %363 = dma.done [#allocation11], 4096
        $region68: #{tpu_custom_call.1} parent=51 // pred_fallthru
          _
        // Predicated region
        $region69: #{tpu_custom_call.1} parent=51 // pred_check
          %p364 = pneg %p186
        $region70: #{tpu_custom_call.1} parent=51 // pred_check_branch
          %366 = sbr.rel (%p364) target = $region72
        $region71: #{tpu_custom_call.1} parent=51 // pred_region
          %367 = dma.done [#allocation11], 4096
        $region72: #{tpu_custom_call.1} parent=51 // pred_fallthru
          _
        %s368 = sand.u32 %s47, 1
        %s369 = scalar_lea.sflag [#allocation5], %s368
        %s370 = sand.u32 %s47, 1
        %s371 = smul.addr %s370, 16
        %s372 = scalar_lea.vmem [#allocation4], %s371
        %p373 = pneg %p60
        %p374 = pneg %p57
        %p375 = pneg %p81
        %p376 = pneg %p78
        %p377 = pneg %p102
        %p378 = pneg %p99
        %p379 = pneg %p123
        %p380 = pneg %p120
        %p381 = pneg %p144
        %p382 = pneg %p141
        %p383 = pneg %p165
        %p384 = pneg %p162
        %p385 = pneg %p186
        %p386 = pneg %p183
        %p387 = pneg %p207
        %p388 = pneg %p204
        %p389 = pneg %p235
        %p390 = pneg %p232
        %s391 = sand.u32 %s222, 1
        %s392 = scalar_lea.sflag [#allocation6], %s391
        %s393 = sand.u32 %s222, 1
        %s394 = smul.addr %s393, 8
        %s395 = scalar_lea.vmem [#allocation13], %s394
        %p396 = scmp.eq.s32.totalorder %s32, 0
        // Predicated region
        $region73: #{tpu_custom_call.1} parent=51 // pred_check
          %p397 = pneg %p396
        $region74: #{tpu_custom_call.1} parent=51 // pred_check_branch
          %399 = sbr.rel (%p397) target = $region76
        $region75: #{tpu_custom_call.1} parent=51 // pred_region
          %v400 = vld [vmem:[%s347] sm:$0xff]
          %v401 = vld [vmem:[%s347 + $0x8] sm:$0xff]
          %v402 = vld [vmem:[#allocation7] sm:$0xff]
          %v403 = vld [vmem:[#allocation7 + $0x8] sm:$0xff]
          %v404 = vld [vmem:[#allocation7 + $0x10] sm:$0xff]
          %v405 = vld [vmem:[#allocation7 + $0x18] sm:$0xff]
          %v406 = vld [vmem:[#allocation7 + $0x20] sm:$0xff]
          %v407 = vld [vmem:[#allocation7 + $0x28] sm:$0xff]
          %v408 = vld [vmem:[#allocation7 + $0x30] sm:$0xff]
          %v409 = vld [vmem:[#allocation7 + $0x38] sm:$0xff]
          %v410 = vld [vmem:[#allocation7 + $0x40] sm:$0xff]
          %v411 = vld [vmem:[#allocation7 + $0x48] sm:$0xff]
          %v412 = vld [vmem:[#allocation7 + $0x50] sm:$0xff]
          %v413 = vld [vmem:[#allocation7 + $0x58] sm:$0xff]
          %v414 = vld [vmem:[#allocation7 + $0x60] sm:$0xff]
          %v415 = vld [vmem:[#allocation7 + $0x68] sm:$0xff]
          %v416 = vld [vmem:[#allocation7 + $0x70] sm:$0xff]
          %v417 = vld [vmem:[#allocation7 + $0x78] sm:$0xff]
          %v418 = vld [vmem:[#allocation7 + $0x80] sm:$0xff]
          %v419 = vld [vmem:[#allocation7 + $0x88] sm:$0xff]
          %v420 = vld [vmem:[#allocation7 + $0x90] sm:$0xff]
          %v421 = vld [vmem:[#allocation7 + $0x98] sm:$0xff]
          %v422 = vld [vmem:[#allocation7 + $0xa0] sm:$0xff]
          %v423 = vld [vmem:[#allocation7 + $0xa8] sm:$0xff]
          %v424 = vld [vmem:[#allocation7 + $0xb0] sm:$0xff]
          %v425 = vld [vmem:[#allocation7 + $0xb8] sm:$0xff]
          %v426 = vld [vmem:[#allocation7 + $0xc0] sm:$0xff]
          %v427 = vld [vmem:[#allocation7 + $0xc8] sm:$0xff]
          %v428 = vld [vmem:[#allocation7 + $0xd0] sm:$0xff]
          %v429 = vld [vmem:[#allocation7 + $0xd8] sm:$0xff]
          %v430 = vld [vmem:[#allocation7 + $0xe0] sm:$0xff]
          %v431 = vld [vmem:[#allocation7 + $0xe8] sm:$0xff]
          %v432 = vld [vmem:[#allocation7 + $0xf0] sm:$0xff]
          %v433 = vld [vmem:[#allocation7 + $0xf8] sm:$0xff]
          %v434 = vld [vmem:[#allocation7 + $0x100] sm:$0xff]
          %v435 = vld [vmem:[#allocation7 + $0x108] sm:$0xff]
          %v436 = vld [vmem:[#allocation7 + $0x110] sm:$0xff]
          %v437 = vld [vmem:[#allocation7 + $0x118] sm:$0xff]
          %v438 = vld [vmem:[#allocation7 + $0x120] sm:$0xff]
          %v439 = vld [vmem:[#allocation7 + $0x128] sm:$0xff]
          %v440 = vld [vmem:[#allocation7 + $0x130] sm:$0xff]
          %v441 = vld [vmem:[#allocation7 + $0x138] sm:$0xff]
          %v442 = vld [vmem:[#allocation7 + $0x140] sm:$0xff]
          %v443 = vld [vmem:[#allocation7 + $0x148] sm:$0xff]
          %v444 = vld [vmem:[#allocation7 + $0x150] sm:$0xff]
          %v445 = vld [vmem:[#allocation7 + $0x158] sm:$0xff]
          %v446 = vld [vmem:[#allocation7 + $0x160] sm:$0xff]
          %v447 = vld [vmem:[#allocation7 + $0x168] sm:$0xff]
          %v448 = vld [vmem:[#allocation7 + $0x170] sm:$0xff]
          %v449 = vld [vmem:[#allocation7 + $0x178] sm:$0xff]
          %v450 = vld [vmem:[%s2] sm:$0x7]
          %v452 = vlaneseq
          %v453 = vshrl.u32 %v452, 7
          %v454 = vsub.s32 0, %v453
          %v455 = vrot.slane %v450, %v454
          %v456 = vlaneseq
          %v457 = vshrl.u32 %v456, 7
          %v458 = vsub.s32 1, %v457
          %v459 = vrot.slane %v450, %v458
          %v460 = vlaneseq
          %v461 = vshrl.u32 %v460, 7
          %v462 = vsub.s32 2, %v461
          %v463 = vrot.slane %v450, %v462
          %467 = vmatprep.subr.mxu0 %v403
          %468 = vmatpush1.msra.mxu0 %v402
          %469 = vmatprep.subr.mxu0 %v406
          %470 = vmatpush1.msra.mxu0 %v405
          %471 = vmatprep.subr.mxu0 %v409
          %472 = vmatpush1.msra.mxu0 %v408
          %473 = vmatprep.subr.mxu0 %v412
          %474 = vmatpush1.msra.mxu0 %v411
          %475 = vmatprep.subr.mxu0 %v415
          %476 = vmatpush1.msra.mxu0 %v414
          %477 = vmatprep.subr.mxu0 %v418
          %478 = vmatpush1.msra.mxu0 %v417
          %479 = vmatprep.subr.mxu0 %v421
          %480 = vmatpush1.msra.mxu0 %v420
          %481 = vmatprep.subr.mxu0 %v424
          %482 = vmatpush1.msra.mxu0 %v423
          %483 = vmatprep.subr.mxu0 %v427
          %484 = vmatpush1.msra.mxu0 %v426
          %485 = vmatprep.subr.mxu0 %v430
          %486 = vmatpush1.msra.mxu0 %v429
          %487 = vmatprep.subr.mxu0 %v433
          %488 = vmatpush1.msra.mxu0 %v432
          %489 = vmatprep.subr.mxu0 %v436
          %490 = vmatpush1.msra.mxu0 %v435
          %491 = vmatprep.subr.mxu0 %v439
          %492 = vmatpush1.msra.mxu0 %v438
          %493 = vmatprep.subr.mxu0 %v442
          %494 = vmatpush1.msra.mxu0 %v441
          %495 = vmatprep.subr.mxu0 %v445
          %496 = vmatpush1.msra.mxu0 %v444
          %497 = vmatprep.subr.mxu0 %v448
          %498 = vmatpush1.msra.mxu0 %v447
          %499 = vmatprep.subr.mxu0 0.0
          %500 = vmatpush1.msra.mxu0 0.0
          %501 = vmatprep.subr.mxu0 0.0
          %502 = vmatpush1.msra.mxu0 0.0
          %503 = vmatprep.subr.mxu0 0.0
          %504 = vmatpush1.msra.mxu0 0.0
          %505 = vmatprep.subr.mxu0 0.0
          %506 = vmatpush1.msra.mxu0 0.0
          %507 = vmatprep.subr.mxu0 0.0
          %508 = vmatpush1.msra.mxu0 0.0
          %509 = vmatprep.subr.mxu0 0.0
          %510 = vmatpush1.msra.mxu0 0.0
          %511 = vmatprep.subr.mxu0 0.0
          %512 = vmatpush1.msra.mxu0 0.0
          %513 = vmatprep.subr.mxu0 0.0
          %514 = vmatpush1.msra.mxu0 0.0
          %515 = vmatprep.subr.mxu0 0.0
          %516 = vmatpush1.msra.mxu0 0.0
          %517 = vmatprep.subr.mxu0 0.0
          %518 = vmatpush1.msra.mxu0 0.0
          %519 = vmatprep.subr.mxu0 0.0
          %520 = vmatpush1.msra.mxu0 0.0
          %521 = vmatprep.subr.mxu0 0.0
          %522 = vmatpush1.msra.mxu0 0.0
          %523 = vmatprep.subr.mxu0 0.0
          %524 = vmatpush1.msra.mxu0 0.0
          %525 = vmatprep.subr.mxu0 0.0
          %526 = vmatpush1.msra.mxu0 0.0
          %527 = vmatprep.subr.mxu0 0.0
          %528 = vmatpush1.msra.mxu0 0.0
          %529 = vmatprep.subr.mxu0 0.0
          %530 = vmatpush1.msra.mxu0 0.0
          %531 = vmatprep.mubr.f32.mxu0 0.0
          %532 = vmatmul.mubr.f32.gmra.mrb[0].mxu0 %v400
          %v533 = vpop.f32.mrb[0].mxu0
          %v534 = vadd.f32 %v455, %v533
          %v535 = vpop.f32.mrb[0].mxu0
          %v536 = vadd.f32 %v459, %v535
          %537 = vmatprep.mubr.f32.mxu0 0.0
          %538 = vmatmul.mubr.f32.gmra.mrb[0].mxu0 %v401
          %v539 = vpop.f32.mrb[0].mxu0
          %v540 = vadd.f32 %v455, %v539
          %v541 = vpop.f32.mrb[0].mxu0
          %v542 = vadd.f32 %v459, %v541
          %543 = vdwg.mxu0
          %544 = vmatprep.subr.mxu0 0.0
          %545 = vmatpush1.msra.mxu0 %v404
          %546 = vmatprep.subr.mxu0 0.0
          %547 = vmatpush1.msra.mxu0 %v407
          %548 = vmatprep.subr.mxu0 0.0
          %549 = vmatpush1.msra.mxu0 %v410
          %550 = vmatprep.subr.mxu0 0.0
          %551 = vmatpush1.msra.mxu0 %v413
          %552 = vmatprep.subr.mxu0 0.0
          %553 = vmatpush1.msra.mxu0 %v416
          %554 = vmatprep.subr.mxu0 0.0
          %555 = vmatpush1.msra.mxu0 %v419
          %556 = vmatprep.subr.mxu0 0.0
          %557 = vmatpush1.msra.mxu0 %v422
          %558 = vmatprep.subr.mxu0 0.0
          %559 = vmatpush1.msra.mxu0 %v425
          %560 = vmatprep.subr.mxu0 0.0
          %561 = vmatpush1.msra.mxu0 %v428
          %562 = vmatprep.subr.mxu0 0.0
          %563 = vmatpush1.msra.mxu0 %v431
          %564 = vmatprep.subr.mxu0 0.0
          %565 = vmatpush1.msra.mxu0 %v434
          %566 = vmatprep.subr.mxu0 0.0
          %567 = vmatpush1.msra.mxu0 %v437
          %568 = vmatprep.subr.mxu0 0.0
          %569 = vmatpush1.msra.mxu0 %v440
          %570 = vmatprep.subr.mxu0 0.0
          %571 = vmatpush1.msra.mxu0 %v443
          %572 = vmatprep.subr.mxu0 0.0
          %573 = vmatpush1.msra.mxu0 %v446
          %574 = vmatprep.subr.mxu0 0.0
          %575 = vmatpush1.msra.mxu0 %v449
          %576 = vmatprep.subr.mxu0 0.0
          %577 = vmatpush1.msra.mxu0 0.0
          %578 = vmatprep.subr.mxu0 0.0
          %579 = vmatpush1.msra.mxu0 0.0
          %580 = vmatprep.subr.mxu0 0.0
          %581 = vmatpush1.msra.mxu0 0.0
          %582 = vmatprep.subr.mxu0 0.0
          %583 = vmatpush1.msra.mxu0 0.0
          %584 = vmatprep.subr.mxu0 0.0
          %585 = vmatpush1.msra.mxu0 0.0
          %586 = vmatprep.subr.mxu0 0.0
          %587 = vmatpush1.msra.mxu0 0.0
          %588 = vmatprep.subr.mxu0 0.0
          %589 = vmatpush1.msra.mxu0 0.0
          %590 = vmatprep.subr.mxu0 0.0
          %591 = vmatpush1.msra.mxu0 0.0
          %592 = vmatprep.subr.mxu0 0.0
          %593 = vmatpush1.msra.mxu0 0.0
          %594 = vmatprep.subr.mxu0 0.0
          %595 = vmatpush1.msra.mxu0 0.0
          %596 = vmatprep.subr.mxu0 0.0
          %597 = vmatpush1.msra.mxu0 0.0
          %598 = vmatprep.subr.mxu0 0.0
          %599 = vmatpush1.msra.mxu0 0.0
          %600 = vmatprep.subr.mxu0 0.0
          %601 = vmatpush1.msra.mxu0 0.0
          %602 = vmatprep.subr.mxu0 0.0
          %603 = vmatpush1.msra.mxu0 0.0
          %604 = vmatprep.subr.mxu0 0.0
          %605 = vmatpush1.msra.mxu0 0.0
          %606 = vmatprep.subr.mxu0 0.0
          %607 = vmatpush1.msra.mxu0 0.0
          %608 = vmatprep.mubr.f32.mxu0 0.0
          %609 = vmatmul.mubr.f32.gmra.mrb[0].mxu0 %v400
          %v610 = vpop.f32.mrb[0].mxu0
          %v611 = vadd.f32 %v463, %v610
          %v612 = vpop.f32.mrb[0].mxu0
          %613 = vmatprep.mubr.f32.mxu0 0.0
          %614 = vmatmul.mubr.f32.gmra.mrb[0].mxu0 %v401
          %v615 = vpop.f32.mrb[0].mxu0
          %v616 = vadd.f32 %v463, %v615
          %v617 = vpop.f32.mrb[0].mxu0
          %618 = vdwg.mxu0
          %619 = vst [vmem:[#allocation2] sm:$0xff] %v534
          %620 = vst [vmem:[#allocation2 + $0x8] sm:$0xff] %v536
          %621 = vst [vmem:[#allocation2 + $0x10] sm:$0xff] %v611
          %622 = vst [vmem:[#allocation2 + $0x18] sm:$0xff] %v540
          %623 = vst [vmem:[#allocation2 + $0x20] sm:$0xff] %v542
          %624 = vst [vmem:[#allocation2 + $0x28] sm:$0xff] %v616
        $region76: #{tpu_custom_call.1} parent=51 // pred_fallthru
          _
        %s625 = smul.u32 %s32, 8
        %s626 = scalar_lea.vmem %s347, %s625 [#allocation4]
        %v627 = vld [vmem:[%s626] sm:$0xff]
        %s628 = sshra.s32 %s625, 3
        %s629 = sand.u32 %s625, 7
        %s630 = smul.u32 %s628, 3
        %s631 = smul.addr %s630, 8
        %s632 = scalar_lea.vmem [#allocation2], %s631
        %v633 = vld [vmem:[%s632] sm:$0xff]
        %v634 = vld [vmem:[#allocation2 + $0x8] sm:$0xff]
        %v635 = vld [vmem:[#allocation2 + $0x20] sm:$0xff]
        %v636 = vld [vmem:[#allocation2 + $0x10] sm:$0xff]
        %v637 = vld [vmem:[#allocation2 + $0x28] sm:$0xff]
        %vm638 = vcmask 261120
        %v640 = vsel %vm638, %v633, 0
        %v643 = vsel %vm638, %v634, 0
        %v646 = vsel %vm638, %v635, 0
        %648 = vmatprep.subr.mxu0 0.0
        %649 = vmatpush1.xpose.msra.mxu0 %v643
        %650 = vmatprep.subr.mxu0 0.0
        %651 = vmatpush1.xpose.msra.mxu0 %v646
        %652 = vmatprep.subr.mxu0 0.0
        %653 = vmatpush1.xpose.msra.mxu0 0.0
        %654 = vmatprep.subr.mxu0 0.0
        %655 = vmatpush1.xpose.msra.mxu0 0.0
        %656 = vmatprep.subr.mxu0 0.0
        %657 = vmatpush1.xpose.msra.mxu0 0.0
        %658 = vmatprep.subr.mxu0 0.0
        %659 = vmatpush1.xpose.msra.mxu0 0.0
        %660 = vmatprep.subr.mxu0 0.0
        %661 = vmatpush1.xpose.msra.mxu0 0.0
        %662 = vmatprep.subr.mxu0 0.0
        %663 = vmatpush1.xpose.msra.mxu0 0.0
        %664 = vmatprep.subr.mxu0 0.0
        %665 = vmatpush1.xpose.msra.mxu0 0.0
        %666 = vmatprep.subr.mxu0 0.0
        %667 = vmatpush1.xpose.msra.mxu0 0.0
        %668 = vmatprep.subr.mxu0 0.0
        %669 = vmatpush1.xpose.msra.mxu0 0.0
        %670 = vmatprep.subr.mxu0 0.0
        %671 = vmatpush1.xpose.msra.mxu0 0.0
        %672 = vmatprep.subr.mxu0 0.0
        %673 = vmatpush1.xpose.msra.mxu0 0.0
        %674 = vmatprep.subr.mxu0 0.0
        %675 = vmatpush1.xpose.msra.mxu0 0.0
        %676 = vmatprep.subr.mxu0 0.0
        %677 = vmatpush1.xpose.msra.mxu0 0.0
        %678 = vmatprep.subr.mxu0 0.0
        %679 = vmatpush1.xpose.msra.mxu0 0.0
        %680 = vmatprep.subr.mxu0 0.0
        %681 = vmatpush1.xpose.msra.mxu0 0.0
        %682 = vmatprep.subr.mxu0 0.0
        %683 = vmatpush1.xpose.msra.mxu0 0.0
        %684 = vmatprep.subr.mxu0 0.0
        %685 = vmatpush1.xpose.msra.mxu0 0.0
        %686 = vmatprep.subr.mxu0 0.0
        %687 = vmatpush1.xpose.msra.mxu0 0.0
        %688 = vmatprep.subr.mxu0 0.0
        %689 = vmatpush1.xpose.msra.mxu0 0.0
        %690 = vmatprep.subr.mxu0 0.0
        %691 = vmatpush1.xpose.msra.mxu0 0.0
        %692 = vmatprep.subr.mxu0 0.0
        %693 = vmatpush1.xpose.msra.mxu0 0.0
        %694 = vmatprep.subr.mxu0 0.0
        %695 = vmatpush1.xpose.msra.mxu0 0.0
        %696 = vmatprep.subr.mxu0 0.0
        %697 = vmatpush1.xpose.msra.mxu0 0.0
        %698 = vmatprep.subr.mxu0 0.0
        %699 = vmatpush1.xpose.msra.mxu0 0.0
        %700 = vmatprep.subr.mxu0 0.0
        %701 = vmatpush1.xpose.msra.mxu0 0.0
        %702 = vmatprep.subr.mxu0 0.0
        %703 = vmatpush1.xpose.msra.mxu0 0.0
        %704 = vmatprep.subr.mxu0 0.0
        %705 = vmatpush1.xpose.msra.mxu0 0.0
        %706 = vmatprep.subr.mxu0 0.0
        %707 = vmatpush1.xpose.msra.mxu0 0.0
        %708 = vmatprep.subr.mxu0 0.0
        %709 = vmatpush1.xpose.msra.mxu0 0.0
        %710 = vmatprep.subr.mxu0 0.0
        %711 = vmatpush1.xpose.msra.mxu0 0.0
        %712 = vmatprep.mubr.f32.mxu0 0.0
        %713 = vmatmul.mubr.f32.gmra.mrb[0].mxu0 %v640
        %v714 = vpop.f32.mrb[0].mxu0
        %v715 = vadd.f32 0.0, %v714
        %v716 = vpop.f32.mrb[0].mxu0
        %717 = vdwg.mxu0
        %vm718 = vcmask 130048
        %v719 = vsel %vm718, %v715, -inf
        %720 = vmax.xlane.f32.xlu0 %v719
        %v721 = vpop.xlane.xlu0 %720
        %v722 = vsub.f32 %v715, %v721
        %v723 = vmul.f32 %v722, 1.442695
        %v724 = vpow.pop %v723
        %v725 = vsel %vm718, %v724, 0.0
        %726 = vadd.xlane.f32.xlu0 %v725
        %v727 = vpop.xlane.xlu0 %726
        %v728 = vrcp.pop %v727
        %v729 = vmul.f32 %v724, %v728
        %v731 = vsel %vm718, %v729, 0
        %733 = vmatprep.subr.mxu0 0.0
        %734 = vmatpush1.msra.mxu0 %v636
        %735 = vmatprep.subr.mxu0 0.0
        %736 = vmatpush1.msra.mxu0 %v637
        %737 = vmatprep.subr.mxu0 0.0
        %738 = vmatpush1.msra.mxu0 0.0
        %739 = vmatprep.subr.mxu0 0.0
        %740 = vmatpush1.msra.mxu0 0.0
        %741 = vmatprep.subr.mxu0 0.0
        %742 = vmatpush1.msra.mxu0 0.0
        %743 = vmatprep.subr.mxu0 0.0
        %744 = vmatpush1.msra.mxu0 0.0
        %745 = vmatprep.subr.mxu0 0.0
        %746 = vmatpush1.msra.mxu0 0.0
        %747 = vmatprep.subr.mxu0 0.0
        %748 = vmatpush1.msra.mxu0 0.0
        %749 = vmatprep.subr.mxu0 0.0
        %750 = vmatpush1.msra.mxu0 0.0
        %751 = vmatprep.subr.mxu0 0.0
        %752 = vmatpush1.msra.mxu0 0.0
        %753 = vmatprep.subr.mxu0 0.0
        %754 = vmatpush1.msra.mxu0 0.0
        %755 = vmatprep.subr.mxu0 0.0
        %756 = vmatpush1.msra.mxu0 0.0
        %757 = vmatprep.subr.mxu0 0.0
        %758 = vmatpush1.msra.mxu0 0.0
        %759 = vmatprep.subr.mxu0 0.0
        %760 = vmatpush1.msra.mxu0 0.0
        %761 = vmatprep.subr.mxu0 0.0
        %762 = vmatpush1.msra.mxu0 0.0
        %763 = vmatprep.subr.mxu0 0.0
        %764 = vmatpush1.msra.mxu0 0.0
        %765 = vmatprep.subr.mxu0 0.0
        %766 = vmatpush1.msra.mxu0 0.0
        %767 = vmatprep.subr.mxu0 0.0
        %768 = vmatpush1.msra.mxu0 0.0
        %769 = vmatprep.subr.mxu0 0.0
        %770 = vmatpush1.msra.mxu0 0.0
        %771 = vmatprep.subr.mxu0 0.0
        %772 = vmatpush1.msra.mxu0 0.0
        %773 = vmatprep.subr.mxu0 0.0
        %774 = vmatpush1.msra.mxu0 0.0
        %775 = vmatprep.subr.mxu0 0.0
        %776 = vmatpush1.msra.mxu0 0.0
        %777 = vmatprep.subr.mxu0 0.0
        %778 = vmatpush1.msra.mxu0 0.0
        %779 = vmatprep.subr.mxu0 0.0
        %780 = vmatpush1.msra.mxu0 0.0
        %781 = vmatprep.subr.mxu0 0.0
        %782 = vmatpush1.msra.mxu0 0.0
        %783 = vmatprep.subr.mxu0 0.0
        %784 = vmatpush1.msra.mxu0 0.0
        %785 = vmatprep.subr.mxu0 0.0
        %786 = vmatpush1.msra.mxu0 0.0
        %787 = vmatprep.subr.mxu0 0.0
        %788 = vmatpush1.msra.mxu0 0.0
        %789 = vmatprep.subr.mxu0 0.0
        %790 = vmatpush1.msra.mxu0 0.0
        %791 = vmatprep.subr.mxu0 0.0
        %792 = vmatpush1.msra.mxu0 0.0
        %793 = vmatprep.subr.mxu0 0.0
        %794 = vmatpush1.msra.mxu0 0.0
        %795 = vmatprep.subr.mxu0 0.0
        %796 = vmatpush1.msra.mxu0 0.0
        %797 = vmatprep.mubr.f32.mxu0 0.0
        %798 = vmatmul.mubr.f32.gmra.mrb[0].mxu0 %v731
        %v799 = vpop.f32.mrb[0].mxu0
        %v800 = vadd.f32 0.0, %v799
        %v801 = vpop.f32.mrb[0].mxu0
        %802 = vdwg.mxu0
        %803 = vst.msk [vmem:[#allocation3] sm:$0xff] %vm638, %v800
        %804 = vrot.lane.b32.xlu0 %v633, 96
        %v805 = vpop.permute.xlu0 %804
        %806 = vrot.lane.b32.xlu0 %v634, 96
        %v807 = vpop.permute.xlu0 %806
        %808 = vrot.lane.b32.xlu0 %v635, 96
        %v809 = vpop.permute.xlu0 %808
        %v810 = vsel %vm638, %v805, 0
        %v812 = vsel %vm638, %v807, 0
        %v814 = vsel %vm638, %v809, 0
        %816 = vmatprep.subr.mxu0 0.0
        %817 = vmatpush1.xpose.msra.mxu0 %v812
        %818 = vmatprep.subr.mxu0 0.0
        %819 = vmatpush1.xpose.msra.mxu0 %v814
        %820 = vmatprep.subr.mxu0 0.0
        %821 = vmatpush1.xpose.msra.mxu0 0.0
        %822 = vmatprep.subr.mxu0 0.0
        %823 = vmatpush1.xpose.msra.mxu0 0.0
        %824 = vmatprep.subr.mxu0 0.0
        %825 = vmatpush1.xpose.msra.mxu0 0.0
        %826 = vmatprep.subr.mxu0 0.0
        %827 = vmatpush1.xpose.msra.mxu0 0.0
        %828 = vmatprep.subr.mxu0 0.0
        %829 = vmatpush1.xpose.msra.mxu0 0.0
        %830 = vmatprep.subr.mxu0 0.0
        %831 = vmatpush1.xpose.msra.mxu0 0.0
        %832 = vmatprep.subr.mxu0 0.0
        %833 = vmatpush1.xpose.msra.mxu0 0.0
        %834 = vmatprep.subr.mxu0 0.0
        %835 = vmatpush1.xpose.msra.mxu0 0.0
        %836 = vmatprep.subr.mxu0 0.0
        %837 = vmatpush1.xpose.msra.mxu0 0.0
        %838 = vmatprep.subr.mxu0 0.0
        %839 = vmatpush1.xpose.msra.mxu0 0.0
        %840 = vmatprep.subr.mxu0 0.0
        %841 = vmatpush1.xpose.msra.mxu0 0.0
        %842 = vmatprep.subr.mxu0 0.0
        %843 = vmatpush1.xpose.msra.mxu0 0.0
        %844 = vmatprep.subr.mxu0 0.0
        %845 = vmatpush1.xpose.msra.mxu0 0.0
        %846 = vmatprep.subr.mxu0 0.0
        %847 = vmatpush1.xpose.msra.mxu0 0.0
        %848 = vmatprep.subr.mxu0 0.0
        %849 = vmatpush1.xpose.msra.mxu0 0.0
        %850 = vmatprep.subr.mxu0 0.0
        %851 = vmatpush1.xpose.msra.mxu0 0.0
        %852 = vmatprep.subr.mxu0 0.0
        %853 = vmatpush1.xpose.msra.mxu0 0.0
        %854 = vmatprep.subr.mxu0 0.0
        %855 = vmatpush1.xpose.msra.mxu0 0.0
        %856 = vmatprep.subr.mxu0 0.0
        %857 = vmatpush1.xpose.msra.mxu0 0.0
        %858 = vmatprep.subr.mxu0 0.0
        %859 = vmatpush1.xpose.msra.mxu0 0.0
        %860 = vmatprep.subr.mxu0 0.0
        %861 = vmatpush1.xpose.msra.mxu0 0.0
        %862 = vmatprep.subr.mxu0 0.0
        %863 = vmatpush1.xpose.msra.mxu0 0.0
        %864 = vmatprep.subr.mxu0 0.0
        %865 = vmatpush1.xpose.msra.mxu0 0.0
        %866 = vmatprep.subr.mxu0 0.0
        %867 = vmatpush1.xpose.msra.mxu0 0.0
        %868 = vmatprep.subr.mxu0 0.0
        %869 = vmatpush1.xpose.msra.mxu0 0.0
        %870 = vmatprep.subr.mxu0 0.0
        %871 = vmatpush1.xpose.msra.mxu0 0.0
        %872 = vmatprep.subr.mxu0 0.0
        %873 = vmatpush1.xpose.msra.mxu0 0.0
        %874 = vmatprep.subr.mxu0 0.0
        %875 = vmatpush1.xpose.msra.mxu0 0.0
        %876 = vmatprep.subr.mxu0 0.0
        %877 = vmatpush1.xpose.msra.mxu0 0.0
        %878 = vmatprep.subr.mxu0 0.0
        %879 = vmatpush1.xpose.msra.mxu0 0.0
        %880 = vmatprep.mubr.f32.mxu0 0.0
        %881 = vmatmul.mubr.f32.gmra.mrb[0].mxu0 %v810
        %v882 = vpop.f32.mrb[0].mxu0
        %v883 = vadd.f32 0.0, %v882
        %v884 = vpop.f32.mrb[0].mxu0
        %885 = vdwg.mxu0
        %v886 = vsel %vm718, %v883, -inf
        %887 = vmax.xlane.f32.xlu0 %v886
        %v888 = vpop.xlane.xlu0 %887
        %v889 = vsub.f32 %v883, %v888
        %v890 = vmul.f32 %v889, 1.442695
        %v891 = vpow.pop %v890
        %v892 = vsel %vm718, %v891, 0.0
        %893 = vadd.xlane.f32.xlu0 %v892
        %v894 = vpop.xlane.xlu0 %893
        %v895 = vrcp.pop %v894
        %v896 = vmul.f32 %v891, %v895
        %899 = vrot.lane.b32.xlu0 %v636, 96
        %v900 = vpop.permute.xlu0 %899
        %901 = vrot.lane.b32.xlu0 %v637, 96
        %v902 = vpop.permute.xlu0 %901
        %v906 = vsel %vm718, %v896, 0
        %908 = vmatprep.subr.mxu0 0.0
        %909 = vmatpush1.msra.mxu0 %v900
        %910 = vmatprep.subr.mxu0 0.0
        %911 = vmatpush1.msra.mxu0 %v902
        %912 = vmatprep.subr.mxu0 0.0
        %913 = vmatpush1.msra.mxu0 0.0
        %914 = vmatprep.subr.mxu0 0.0
        %915 = vmatpush1.msra.mxu0 0.0
        %916 = vmatprep.subr.mxu0 0.0
        %917 = vmatpush1.msra.mxu0 0.0
        %918 = vmatprep.subr.mxu0 0.0
        %919 = vmatpush1.msra.mxu0 0.0
        %920 = vmatprep.subr.mxu0 0.0
        %921 = vmatpush1.msra.mxu0 0.0
        %922 = vmatprep.subr.mxu0 0.0
        %923 = vmatpush1.msra.mxu0 0.0
        %924 = vmatprep.subr.mxu0 0.0
        %925 = vmatpush1.msra.mxu0 0.0
        %926 = vmatprep.subr.mxu0 0.0
        %927 = vmatpush1.msra.mxu0 0.0
        %928 = vmatprep.subr.mxu0 0.0
        %929 = vmatpush1.msra.mxu0 0.0
        %930 = vmatprep.subr.mxu0 0.0
        %931 = vmatpush1.msra.mxu0 0.0
        %932 = vmatprep.subr.mxu0 0.0
        %933 = vmatpush1.msra.mxu0 0.0
        %934 = vmatprep.subr.mxu0 0.0
        %935 = vmatpush1.msra.mxu0 0.0
        %936 = vmatprep.subr.mxu0 0.0
        %937 = vmatpush1.msra.mxu0 0.0
        %938 = vmatprep.subr.mxu0 0.0
        %939 = vmatpush1.msra.mxu0 0.0
        %940 = vmatprep.subr.mxu0 0.0
        %941 = vmatpush1.msra.mxu0 0.0
        %942 = vmatprep.subr.mxu0 0.0
        %943 = vmatpush1.msra.mxu0 0.0
        %944 = vmatprep.subr.mxu0 0.0
        %945 = vmatpush1.msra.mxu0 0.0
        %946 = vmatprep.subr.mxu0 0.0
        %947 = vmatpush1.msra.mxu0 0.0
        %948 = vmatprep.subr.mxu0 0.0
        %949 = vmatpush1.msra.mxu0 0.0
        %950 = vmatprep.subr.mxu0 0.0
        %951 = vmatpush1.msra.mxu0 0.0
        %952 = vmatprep.subr.mxu0 0.0
        %953 = vmatpush1.msra.mxu0 0.0
        %954 = vmatprep.subr.mxu0 0.0
        %955 = vmatpush1.msra.mxu0 0.0
        %956 = vmatprep.subr.mxu0 0.0
        %957 = vmatpush1.msra.mxu0 0.0
        %958 = vmatprep.subr.mxu0 0.0
        %959 = vmatpush1.msra.mxu0 0.0
        %960 = vmatprep.subr.mxu0 0.0
        %961 = vmatpush1.msra.mxu0 0.0
        %962 = vmatprep.subr.mxu0 0.0
        %963 = vmatpush1.msra.mxu0 0.0
        %964 = vmatprep.subr.mxu0 0.0
        %965 = vmatpush1.msra.mxu0 0.0
        %966 = vmatprep.subr.mxu0 0.0
        %967 = vmatpush1.msra.mxu0 0.0
        %968 = vmatprep.subr.mxu0 0.0
        %969 = vmatpush1.msra.mxu0 0.0
        %970 = vmatprep.subr.mxu0 0.0
        %971 = vmatpush1.msra.mxu0 0.0
        %972 = vmatprep.mubr.f32.mxu0 0.0
        %973 = vmatmul.mubr.f32.gmra.mrb[0].mxu0 %v906
        %v974 = vpop.f32.mrb[0].mxu0
        %v975 = vadd.f32 0.0, %v974
        %v976 = vpop.f32.mrb[0].mxu0
        %977 = vdwg.mxu0
        %979 = vrot.lane.b32.xlu0 %v975, 32
        %v980 = vpop.permute.xlu0 %979
        %vm982 = vcmask 523520
        %983 = vst.msk [vmem:[#allocation3] sm:$0xff] %vm982, %v980
        %984 = vrot.lane.b32.xlu0 %v633, 64
        %v985 = vpop.permute.xlu0 %984
        %986 = vrot.lane.b32.xlu0 %v634, 64
        %v987 = vpop.permute.xlu0 %986
        %988 = vrot.lane.b32.xlu0 %v635, 64
        %v989 = vpop.permute.xlu0 %988
        %v990 = vsel %vm638, %v985, 0
        %v992 = vsel %vm638, %v987, 0
        %v994 = vsel %vm638, %v989, 0
        %996 = vmatprep.subr.mxu0 0.0
        %997 = vmatpush1.xpose.msra.mxu0 %v992
        %998 = vmatprep.subr.mxu0 0.0
        %999 = vmatpush1.xpose.msra.mxu0 %v994
        %1000 = vmatprep.subr.mxu0 0.0
        %1001 = vmatpush1.xpose.msra.mxu0 0.0
        %1002 = vmatprep.subr.mxu0 0.0
        %1003 = vmatpush1.xpose.msra.mxu0 0.0
        %1004 = vmatprep.subr.mxu0 0.0
        %1005 = vmatpush1.xpose.msra.mxu0 0.0
        %1006 = vmatprep.subr.mxu0 0.0
        %1007 = vmatpush1.xpose.msra.mxu0 0.0
        %1008 = vmatprep.subr.mxu0 0.0
        %1009 = vmatpush1.xpose.msra.mxu0 0.0
        %1010 = vmatprep.subr.mxu0 0.0
        %1011 = vmatpush1.xpose.msra.mxu0 0.0
        %1012 = vmatprep.subr.mxu0 0.0
        %1013 = vmatpush1.xpose.msra.mxu0 0.0
        %1014 = vmatprep.subr.mxu0 0.0
        %1015 = vmatpush1.xpose.msra.mxu0 0.0
        %1016 = vmatprep.subr.mxu0 0.0
        %1017 = vmatpush1.xpose.msra.mxu0 0.0
        %1018 = vmatprep.subr.mxu0 0.0
        %1019 = vmatpush1.xpose.msra.mxu0 0.0
        %1020 = vmatprep.subr.mxu0 0.0
        %1021 = vmatpush1.xpose.msra.mxu0 0.0
        %1022 = vmatprep.subr.mxu0 0.0
        %1023 = vmatpush1.xpose.msra.mxu0 0.0
        %1024 = vmatprep.subr.mxu0 0.0
        %1025 = vmatpush1.xpose.msra.mxu0 0.0
        %1026 = vmatprep.subr.mxu0 0.0
        %1027 = vmatpush1.xpose.msra.mxu0 0.0
        %1028 = vmatprep.subr.mxu0 0.0
        %1029 = vmatpush1.xpose.msra.mxu0 0.0
        %1030 = vmatprep.subr.mxu0 0.0
        %1031 = vmatpush1.xpose.msra.mxu0 0.0
        %1032 = vmatprep.subr.mxu0 0.0
        %1033 = vmatpush1.xpose.msra.mxu0 0.0
        %1034 = vmatprep.subr.mxu0 0.0
        %1035 = vmatpush1.xpose.msra.mxu0 0.0
        %1036 = vmatprep.subr.mxu0 0.0
        %1037 = vmatpush1.xpose.msra.mxu0 0.0
        %1038 = vmatprep.subr.mxu0 0.0
        %1039 = vmatpush1.xpose.msra.mxu0 0.0
        %1040 = vmatprep.subr.mxu0 0.0
        %1041 = vmatpush1.xpose.msra.mxu0 0.0
        %1042 = vmatprep.subr.mxu0 0.0
        %1043 = vmatpush1.xpose.msra.mxu0 0.0
        %1044 = vmatprep.subr.mxu0 0.0
        %1045 = vmatpush1.xpose.msra.mxu0 0.0
        %1046 = vmatprep.subr.mxu0 0.0
        %1047 = vmatpush1.xpose.msra.mxu0 0.0
        %1048 = vmatprep.subr.mxu0 0.0
        %1049 = vmatpush1.xpose.msra.mxu0 0.0
        %1050 = vmatprep.subr.mxu0 0.0
        %1051 = vmatpush1.xpose.msra.mxu0 0.0
        %1052 = vmatprep.subr.mxu0 0.0
        %1053 = vmatpush1.xpose.msra.mxu0 0.0
        %1054 = vmatprep.subr.mxu0 0.0
        %1055 = vmatpush1.xpose.msra.mxu0 0.0
        %1056 = vmatprep.subr.mxu0 0.0
        %1057 = vmatpush1.xpose.msra.mxu0 0.0
        %1058 = vmatprep.subr.mxu0 0.0
        %1059 = vmatpush1.xpose.msra.mxu0 0.0
        %1060 = vmatprep.mubr.f32.mxu0 0.0
        %1061 = vmatmul.mubr.f32.gmra.mrb[0].mxu0 %v990
        %v1062 = vpop.f32.mrb[0].mxu0
        %v1063 = vadd.f32 0.0, %v1062
        %v1064 = vpop.f32.mrb[0].mxu0
        %1065 = vdwg.mxu0
        %v1066 = vsel %vm718, %v1063, -inf
        %1067 = vmax.xlane.f32.xlu0 %v1066
        %v1068 = vpop.xlane.xlu0 %1067
        %v1069 = vsub.f32 %v1063, %v1068
        %v1070 = vmul.f32 %v1069, 1.442695
        %v1071 = vpow.pop %v1070
        %v1072 = vsel %vm718, %v1071, 0.0
        %1073 = vadd.xlane.f32.xlu0 %v1072
        %v1074 = vpop.xlane.xlu0 %1073
        %v1075 = vrcp.pop %v1074
        %v1076 = vmul.f32 %v1071, %v1075
        %1077 = vrot.lane.b32.xlu0 %v636, 64
        %v1078 = vpop.permute.xlu0 %1077
        %1079 = vrot.lane.b32.xlu0 %v637, 64
        %v1080 = vpop.permute.xlu0 %1079
        %v1084 = vsel %vm718, %v1076, 0
        %1086 = vmatprep.subr.mxu0 0.0
        %1087 = vmatpush1.msra.mxu0 %v1078
        %1088 = vmatprep.subr.mxu0 0.0
        %1089 = vmatpush1.msra.mxu0 %v1080
        %1090 = vmatprep.subr.mxu0 0.0
        %1091 = vmatpush1.msra.mxu0 0.0
        %1092 = vmatprep.subr.mxu0 0.0
        %1093 = vmatpush1.msra.mxu0 0.0
        %1094 = vmatprep.subr.mxu0 0.0
        %1095 = vmatpush1.msra.mxu0 0.0
        %1096 = vmatprep.subr.mxu0 0.0
        %1097 = vmatpush1.msra.mxu0 0.0
        %1098 = vmatprep.subr.mxu0 0.0
        %1099 = vmatpush1.msra.mxu0 0.0
        %1100 = vmatprep.subr.mxu0 0.0
        %1101 = vmatpush1.msra.mxu0 0.0
        %1102 = vmatprep.subr.mxu0 0.0
        %1103 = vmatpush1.msra.mxu0 0.0
        %1104 = vmatprep.subr.mxu0 0.0
        %1105 = vmatpush1.msra.mxu0 0.0
        %1106 = vmatprep.subr.mxu0 0.0
        %1107 = vmatpush1.msra.mxu0 0.0
        %1108 = vmatprep.subr.mxu0 0.0
        %1109 = vmatpush1.msra.mxu0 0.0
        %1110 = vmatprep.subr.mxu0 0.0
        %1111 = vmatpush1.msra.mxu0 0.0
        %1112 = vmatprep.subr.mxu0 0.0
        %1113 = vmatpush1.msra.mxu0 0.0
        %1114 = vmatprep.subr.mxu0 0.0
        %1115 = vmatpush1.msra.mxu0 0.0
        %1116 = vmatprep.subr.mxu0 0.0
        %1117 = vmatpush1.msra.mxu0 0.0
        %1118 = vmatprep.subr.mxu0 0.0
        %1119 = vmatpush1.msra.mxu0 0.0
        %1120 = vmatprep.subr.mxu0 0.0
        %1121 = vmatpush1.msra.mxu0 0.0
        %1122 = vmatprep.subr.mxu0 0.0
        %1123 = vmatpush1.msra.mxu0 0.0
        %1124 = vmatprep.subr.mxu0 0.0
        %1125 = vmatpush1.msra.mxu0 0.0
        %1126 = vmatprep.subr.mxu0 0.0
        %1127 = vmatpush1.msra.mxu0 0.0
        %1128 = vmatprep.subr.mxu0 0.0
        %1129 = vmatpush1.msra.mxu0 0.0
        %1130 = vmatprep.subr.mxu0 0.0
        %1131 = vmatpush1.msra.mxu0 0.0
        %1132 = vmatprep.subr.mxu0 0.0
        %1133 = vmatpush1.msra.mxu0 0.0
        %1134 = vmatprep.subr.mxu0 0.0
        %1135 = vmatpush1.msra.mxu0 0.0
        %1136 = vmatprep.subr.mxu0 0.0
        %1137 = vmatpush1.msra.mxu0 0.0
        %1138 = vmatprep.subr.mxu0 0.0
        %1139 = vmatpush1.msra.mxu0 0.0
        %1140 = vmatprep.subr.mxu0 0.0
        %1141 = vmatpush1.msra.mxu0 0.0
        %1142 = vmatprep.subr.mxu0 0.0
        %1143 = vmatpush1.msra.mxu0 0.0
        %1144 = vmatprep.subr.mxu0 0.0
        %1145 = vmatpush1.msra.mxu0 0.0
        %1146 = vmatprep.subr.mxu0 0.0
        %1147 = vmatpush1.msra.mxu0 0.0
        %1148 = vmatprep.subr.mxu0 0.0
        %1149 = vmatpush1.msra.mxu0 0.0
        %1150 = vmatprep.mubr.f32.mxu0 0.0
        %1151 = vmatmul.mubr.f32.gmra.mrb[0].mxu0 %v1084
        %v1152 = vpop.f32.mrb[0].mxu0
        %v1153 = vadd.f32 0.0, %v1152
        %v1154 = vpop.f32.mrb[0].mxu0
        %1155 = vdwg.mxu0
        %1157 = vrot.lane.b32.xlu0 %v1153, 64
        %v1158 = vpop.permute.xlu0 %1157
        %vm1160 = vcmask 785920
        %1161 = vst.msk [vmem:[#allocation3] sm:$0xff] %vm1160, %v1158
        %1162 = vrot.lane.b32.xlu0 %v633, 32
        %v1163 = vpop.permute.xlu0 %1162
        %1164 = vrot.lane.b32.xlu0 %v634, 32
        %v1165 = vpop.permute.xlu0 %1164
        %1166 = vrot.lane.b32.xlu0 %v635, 32
        %v1167 = vpop.permute.xlu0 %1166
        %v1168 = vsel %vm638, %v1163, 0
        %v1170 = vsel %vm638, %v1165, 0
        %v1172 = vsel %vm638, %v1167, 0
        %1174 = vmatprep.subr.mxu0 0.0
        %1175 = vmatpush1.xpose.msra.mxu0 %v1170
        %1176 = vmatprep.subr.mxu0 0.0
        %1177 = vmatpush1.xpose.msra.mxu0 %v1172
        %1178 = vmatprep.subr.mxu0 0.0
        %1179 = vmatpush1.xpose.msra.mxu0 0.0
        %1180 = vmatprep.subr.mxu0 0.0
        %1181 = vmatpush1.xpose.msra.mxu0 0.0
        %1182 = vmatprep.subr.mxu0 0.0
        %1183 = vmatpush1.xpose.msra.mxu0 0.0
        %1184 = vmatprep.subr.mxu0 0.0
        %1185 = vmatpush1.xpose.msra.mxu0 0.0
        %1186 = vmatprep.subr.mxu0 0.0
        %1187 = vmatpush1.xpose.msra.mxu0 0.0
        %1188 = vmatprep.subr.mxu0 0.0
        %1189 = vmatpush1.xpose.msra.mxu0 0.0
        %1190 = vmatprep.subr.mxu0 0.0
        %1191 = vmatpush1.xpose.msra.mxu0 0.0
        %1192 = vmatprep.subr.mxu0 0.0
        %1193 = vmatpush1.xpose.msra.mxu0 0.0
        %1194 = vmatprep.subr.mxu0 0.0
        %1195 = vmatpush1.xpose.msra.mxu0 0.0
        %1196 = vmatprep.subr.mxu0 0.0
        %1197 = vmatpush1.xpose.msra.mxu0 0.0
        %1198 = vmatprep.subr.mxu0 0.0
        %1199 = vmatpush1.xpose.msra.mxu0 0.0
        %1200 = vmatprep.subr.mxu0 0.0
        %1201 = vmatpush1.xpose.msra.mxu0 0.0
        %1202 = vmatprep.subr.mxu0 0.0
        %1203 = vmatpush1.xpose.msra.mxu0 0.0
        %1204 = vmatprep.subr.mxu0 0.0
        %1205 = vmatpush1.xpose.msra.mxu0 0.0
        %1206 = vmatprep.subr.mxu0 0.0
        %1207 = vmatpush1.xpose.msra.mxu0 0.0
        %1208 = vmatprep.subr.mxu0 0.0
        %1209 = vmatpush1.xpose.msra.mxu0 0.0
        %1210 = vmatprep.subr.mxu0 0.0
        %1211 = vmatpush1.xpose.msra.mxu0 0.0
        %1212 = vmatprep.subr.mxu0 0.0
        %1213 = vmatpush1.xpose.msra.mxu0 0.0
        %1214 = vmatprep.subr.mxu0 0.0
        %1215 = vmatpush1.xpose.msra.mxu0 0.0
        %1216 = vmatprep.subr.mxu0 0.0
        %1217 = vmatpush1.xpose.msra.mxu0 0.0
        %1218 = vmatprep.subr.mxu0 0.0
        %1219 = vmatpush1.xpose.msra.mxu0 0.0
        %1220 = vmatprep.subr.mxu0 0.0
        %1221 = vmatpush1.xpose.msra.mxu0 0.0
        %1222 = vmatprep.subr.mxu0 0.0
        %1223 = vmatpush1.xpose.msra.mxu0 0.0
        %1224 = vmatprep.subr.mxu0 0.0
        %1225 = vmatpush1.xpose.msra.mxu0 0.0
        %1226 = vmatprep.subr.mxu0 0.0
        %1227 = vmatpush1.xpose.msra.mxu0 0.0
        %1228 = vmatprep.subr.mxu0 0.0
        %1229 = vmatpush1.xpose.msra.mxu0 0.0
        %1230 = vmatprep.subr.mxu0 0.0
        %1231 = vmatpush1.xpose.msra.mxu0 0.0
        %1232 = vmatprep.subr.mxu0 0.0
        %1233 = vmatpush1.xpose.msra.mxu0 0.0
        %1234 = vmatprep.subr.mxu0 0.0
        %1235 = vmatpush1.xpose.msra.mxu0 0.0
        %1236 = vmatprep.subr.mxu0 0.0
        %1237 = vmatpush1.xpose.msra.mxu0 0.0
        %1238 = vmatprep.mubr.f32.mxu0 0.0
        %1239 = vmatmul.mubr.f32.gmra.mrb[0].mxu0 %v1168
        %v1240 = vpop.f32.mrb[0].mxu0
        %v1241 = vadd.f32 0.0, %v1240
        %v1242 = vpop.f32.mrb[0].mxu0
        %1243 = vdwg.mxu0
        %v1244 = vsel %vm718, %v1241, -inf
        %1245 = vmax.xlane.f32.xlu0 %v1244
        %v1246 = vpop.xlane.xlu0 %1245
        %v1247 = vsub.f32 %v1241, %v1246
        %v1248 = vmul.f32 %v1247, 1.442695
        %v1249 = vpow.pop %v1248
        %v1250 = vsel %vm718, %v1249, 0.0
        %1251 = vadd.xlane.f32.xlu0 %v1250
        %v1252 = vpop.xlane.xlu0 %1251
        %v1253 = vrcp.pop %v1252
        %v1254 = vmul.f32 %v1249, %v1253
        %1255 = vrot.lane.b32.xlu0 %v636, 32
        %v1256 = vpop.permute.xlu0 %1255
        %1257 = vrot.lane.b32.xlu0 %v637, 32
        %v1258 = vpop.permute.xlu0 %1257
        %v1262 = vsel %vm718, %v1254, 0
        %1264 = vmatprep.subr.mxu0 0.0
        %1265 = vmatpush1.msra.mxu0 %v1256
        %1266 = vmatprep.subr.mxu0 0.0
        %1267 = vmatpush1.msra.mxu0 %v1258
        %1268 = vmatprep.subr.mxu0 0.0
        %1269 = vmatpush1.msra.mxu0 0.0
        %1270 = vmatprep.subr.mxu0 0.0
        %1271 = vmatpush1.msra.mxu0 0.0
        %1272 = vmatprep.subr.mxu0 0.0
        %1273 = vmatpush1.msra.mxu0 0.0
        %1274 = vmatprep.subr.mxu0 0.0
        %1275 = vmatpush1.msra.mxu0 0.0
        %1276 = vmatprep.subr.mxu0 0.0
        %1277 = vmatpush1.msra.mxu0 0.0
        %1278 = vmatprep.subr.mxu0 0.0
        %1279 = vmatpush1.msra.mxu0 0.0
        %1280 = vmatprep.subr.mxu0 0.0
        %1281 = vmatpush1.msra.mxu0 0.0
        %1282 = vmatprep.subr.mxu0 0.0
        %1283 = vmatpush1.msra.mxu0 0.0
        %1284 = vmatprep.subr.mxu0 0.0
        %1285 = vmatpush1.msra.mxu0 0.0
        %1286 = vmatprep.subr.mxu0 0.0
        %1287 = vmatpush1.msra.mxu0 0.0
        %1288 = vmatprep.subr.mxu0 0.0
        %1289 = vmatpush1.msra.mxu0 0.0
        %1290 = vmatprep.subr.mxu0 0.0
        %1291 = vmatpush1.msra.mxu0 0.0
        %1292 = vmatprep.subr.mxu0 0.0
        %1293 = vmatpush1.msra.mxu0 0.0
        %1294 = vmatprep.subr.mxu0 0.0
        %1295 = vmatpush1.msra.mxu0 0.0
        %1296 = vmatprep.subr.mxu0 0.0
        %1297 = vmatpush1.msra.mxu0 0.0
        %1298 = vmatprep.subr.mxu0 0.0
        %1299 = vmatpush1.msra.mxu0 0.0
        %1300 = vmatprep.subr.mxu0 0.0
        %1301 = vmatpush1.msra.mxu0 0.0
        %1302 = vmatprep.subr.mxu0 0.0
        %1303 = vmatpush1.msra.mxu0 0.0
        %1304 = vmatprep.subr.mxu0 0.0
        %1305 = vmatpush1.msra.mxu0 0.0
        %1306 = vmatprep.subr.mxu0 0.0
        %1307 = vmatpush1.msra.mxu0 0.0
        %1308 = vmatprep.subr.mxu0 0.0
        %1309 = vmatpush1.msra.mxu0 0.0
        %1310 = vmatprep.subr.mxu0 0.0
        %1311 = vmatpush1.msra.mxu0 0.0
        %1312 = vmatprep.subr.mxu0 0.0
        %1313 = vmatpush1.msra.mxu0 0.0
        %1314 = vmatprep.subr.mxu0 0.0
        %1315 = vmatpush1.msra.mxu0 0.0
        %1316 = vmatprep.subr.mxu0 0.0
        %1317 = vmatpush1.msra.mxu0 0.0
        %1318 = vmatprep.subr.mxu0 0.0
        %1319 = vmatpush1.msra.mxu0 0.0
        %1320 = vmatprep.subr.mxu0 0.0
        %1321 = vmatpush1.msra.mxu0 0.0
        %1322 = vmatprep.subr.mxu0 0.0
        %1323 = vmatpush1.msra.mxu0 0.0
        %1324 = vmatprep.subr.mxu0 0.0
        %1325 = vmatpush1.msra.mxu0 0.0
        %1326 = vmatprep.subr.mxu0 0.0
        %1327 = vmatpush1.msra.mxu0 0.0
        %1328 = vmatprep.mubr.f32.mxu0 0.0
        %1329 = vmatmul.mubr.f32.gmra.mrb[0].mxu0 %v1262
        %v1330 = vpop.f32.mrb[0].mxu0
        %v1331 = vadd.f32 0.0, %v1330
        %v1332 = vpop.f32.mrb[0].mxu0
        %1333 = vdwg.mxu0
        %1335 = vrot.lane.b32.xlu0 %v1331, 96
        %v1336 = vpop.permute.xlu0 %1335
        %vm1338 = vcmask 1048320
        %1339 = vst.msk [vmem:[#allocation3] sm:$0xff] %vm1338, %v1336
        %v1340 = vld [vmem:[%s7] sm:$0x3f]
        %v1341 = vld [vmem:[#allocation3] sm:$0xff]
        %v1342 = vld [vmem:[#allocation9] sm:$0xff]
        %v1343 = vld [vmem:[#allocation9 + $0x8] sm:$0xff]
        %v1344 = vld [vmem:[#allocation9 + $0x10] sm:$0xff]
        %v1345 = vld [vmem:[#allocation9 + $0x18] sm:$0xff]
        %v1346 = vld [vmem:[#allocation9 + $0x20] sm:$0xff]
        %v1347 = vld [vmem:[#allocation9 + $0x28] sm:$0xff]
        %v1348 = vld [vmem:[#allocation9 + $0x30] sm:$0xff]
        %v1349 = vld [vmem:[#allocation9 + $0x38] sm:$0xff]
        %v1350 = vld [vmem:[#allocation9 + $0x40] sm:$0xff]
        %v1351 = vld [vmem:[#allocation9 + $0x48] sm:$0xff]
        %v1352 = vld [vmem:[#allocation9 + $0x50] sm:$0xff]
        %v1353 = vld [vmem:[#allocation9 + $0x58] sm:$0xff]
        %v1354 = vld [vmem:[#allocation9 + $0x60] sm:$0xff]
        %v1355 = vld [vmem:[#allocation9 + $0x68] sm:$0xff]
        %v1356 = vld [vmem:[#allocation9 + $0x70] sm:$0xff]
        %v1357 = vld [vmem:[#allocation9 + $0x78] sm:$0xff]
        %v1358 = vlaneseq
        %v1359 = vshrl.u32 %v1358, 7
        %v1360 = vsub.s32 0, %v1359
        %v1361 = vrot.slane %v1340, %v1360
        %1362 = vmatprep.subr.mxu0 0.0
        %1363 = vmatpush1.msra.mxu0 %v1342
        %1364 = vmatprep.subr.mxu0 0.0
        %1365 = vmatpush1.msra.mxu0 %v1343
        %1366 = vmatprep.subr.mxu0 0.0
        %1367 = vmatpush1.msra.mxu0 %v1344
        %1368 = vmatprep.subr.mxu0 0.0
        %1369 = vmatpush1.msra.mxu0 %v1345
        %1370 = vmatprep.subr.mxu0 0.0
        %1371 = vmatpush1.msra.mxu0 %v1346
        %1372 = vmatprep.subr.mxu0 0.0
        %1373 = vmatpush1.msra.mxu0 %v1347
        %1374 = vmatprep.subr.mxu0 0.0
        %1375 = vmatpush1.msra.mxu0 %v1348
        %1376 = vmatprep.subr.mxu0 0.0
        %1377 = vmatpush1.msra.mxu0 %v1349
        %1378 = vmatprep.subr.mxu0 0.0
        %1379 = vmatpush1.msra.mxu0 %v1350
        %1380 = vmatprep.subr.mxu0 0.0
        %1381 = vmatpush1.msra.mxu0 %v1351
        %1382 = vmatprep.subr.mxu0 0.0
        %1383 = vmatpush1.msra.mxu0 %v1352
        %1384 = vmatprep.subr.mxu0 0.0
        %1385 = vmatpush1.msra.mxu0 %v1353
        %1386 = vmatprep.subr.mxu0 0.0
        %1387 = vmatpush1.msra.mxu0 %v1354
        %1388 = vmatprep.subr.mxu0 0.0
        %1389 = vmatpush1.msra.mxu0 %v1355
        %1390 = vmatprep.subr.mxu0 0.0
        %1391 = vmatpush1.msra.mxu0 %v1356
        %1392 = vmatprep.subr.mxu0 0.0
        %1393 = vmatpush1.msra.mxu0 %v1357
        %1394 = vmatprep.subr.mxu0 0.0
        %1395 = vmatpush1.msra.mxu0 0.0
        %1396 = vmatprep.subr.mxu0 0.0
        %1397 = vmatpush1.msra.mxu0 0.0
        %1398 = vmatprep.subr.mxu0 0.0
        %1399 = vmatpush1.msra.mxu0 0.0
        %1400 = vmatprep.subr.mxu0 0.0
        %1401 = vmatpush1.msra.mxu0 0.0
        %1402 = vmatprep.subr.mxu0 0.0
        %1403 = vmatpush1.msra.mxu0 0.0
        %1404 = vmatprep.subr.mxu0 0.0
        %1405 = vmatpush1.msra.mxu0 0.0
        %1406 = vmatprep.subr.mxu0 0.0
        %1407 = vmatpush1.msra.mxu0 0.0
        %1408 = vmatprep.subr.mxu0 0.0
        %1409 = vmatpush1.msra.mxu0 0.0
        %1410 = vmatprep.subr.mxu0 0.0
        %1411 = vmatpush1.msra.mxu0 0.0
        %1412 = vmatprep.subr.mxu0 0.0
        %1413 = vmatpush1.msra.mxu0 0.0
        %1414 = vmatprep.subr.mxu0 0.0
        %1415 = vmatpush1.msra.mxu0 0.0
        %1416 = vmatprep.subr.mxu0 0.0
        %1417 = vmatpush1.msra.mxu0 0.0
        %1418 = vmatprep.subr.mxu0 0.0
        %1419 = vmatpush1.msra.mxu0 0.0
        %1420 = vmatprep.subr.mxu0 0.0
        %1421 = vmatpush1.msra.mxu0 0.0
        %1422 = vmatprep.subr.mxu0 0.0
        %1423 = vmatpush1.msra.mxu0 0.0
        %1424 = vmatprep.subr.mxu0 0.0
        %1425 = vmatpush1.msra.mxu0 0.0
        %1426 = vmatprep.mubr.f32.mxu0 0.0
        %1427 = vmatmul.mubr.f32.gmra.mrb[0].mxu0 %v1341
        %v1428 = vpop.f32.mrb[0].mxu0
        %v1429 = vadd.f32 %v1361, %v1428
        %v1430 = vpop.f32.mrb[0].mxu0
        %1431 = vdwg.mxu0
        %v1432 = vadd.f32 %v627, %v1429
        %1433 = vadd.xlane.f32.xlu0 %v1432
        %v1434 = vpop.xlane.xlu0 %1433
        %v1435 = vmul.f32 %v1434, 0.0078125
        %v1436 = vmul.f32 %v1432, %v1432
        %1437 = vadd.xlane.f32.xlu0 %v1436
        %v1438 = vpop.xlane.xlu0 %1437
        %v1439 = vmul.f32 %v1438, 0.0078125
        %v1440 = vmul.f32 %v1435, %v1435
        %v1441 = vsub.f32 %v1439, %v1440
        %v1442 = vsub.f32 %v1432, %v1435
        %v1443 = vadd.f32 %v1441, 1e-05
        %v1444 = vrsqrt.pop %v1443
        %v1445 = vmul.f32 %v1442, %v1444
        %v1446 = vlaneseq
        %v1447 = vshrl.u32 %v1446, 7
        %v1448 = vsub.s32 1, %v1447
        %v1449 = vrot.slane %v1340, %v1448
        %v1450 = vmul.f32 %v1445, %v1449
        %v1451 = vlaneseq
        %v1452 = vshrl.u32 %v1451, 7
        %v1453 = vsub.s32 2, %v1452
        %v1454 = vrot.slane %v1340, %v1453
        %v1455 = vadd.f32 %v1450, %v1454
        %v1456 = vld [vmem:[#allocation10] sm:$0xff]
        %v1457 = vld [vmem:[#allocation10 + $0x8] sm:$0xff]
        %v1458 = vld [vmem:[#allocation10 + $0x10] sm:$0xff]
        %v1459 = vld [vmem:[#allocation10 + $0x18] sm:$0xff]
        %v1460 = vld [vmem:[#allocation10 + $0x20] sm:$0xff]
        %v1461 = vld [vmem:[#allocation10 + $0x28] sm:$0xff]
        %v1462 = vld [vmem:[#allocation10 + $0x30] sm:$0xff]
        %v1463 = vld [vmem:[#allocation10 + $0x38] sm:$0xff]
        %v1464 = vld [vmem:[#allocation10 + $0x40] sm:$0xff]
        %v1465 = vld [vmem:[#allocation10 + $0x48] sm:$0xff]
        %v1466 = vld [vmem:[#allocation10 + $0x50] sm:$0xff]
        %v1467 = vld [vmem:[#allocation10 + $0x58] sm:$0xff]
        %v1468 = vld [vmem:[#allocation10 + $0x60] sm:$0xff]
        %v1469 = vld [vmem:[#allocation10 + $0x68] sm:$0xff]
        %v1470 = vld [vmem:[#allocation10 + $0x70] sm:$0xff]
        %v1471 = vld [vmem:[#allocation10 + $0x78] sm:$0xff]
        %v1472 = vld [vmem:[#allocation10 + $0x80] sm:$0xff]
        %v1473 = vld [vmem:[#allocation10 + $0x88] sm:$0xff]
        %v1474 = vld [vmem:[#allocation10 + $0x90] sm:$0xff]
        %v1475 = vld [vmem:[#allocation10 + $0x98] sm:$0xff]
        %v1476 = vld [vmem:[#allocation10 + $0xa0] sm:$0xff]
        %v1477 = vld [vmem:[#allocation10 + $0xa8] sm:$0xff]
        %v1478 = vld [vmem:[#allocation10 + $0xb0] sm:$0xff]
        %v1479 = vld [vmem:[#allocation10 + $0xb8] sm:$0xff]
        %v1480 = vld [vmem:[#allocation10 + $0xc0] sm:$0xff]
        %v1481 = vld [vmem:[#allocation10 + $0xc8] sm:$0xff]
        %v1482 = vld [vmem:[#allocation10 + $0xd0] sm:$0xff]
        %v1483 = vld [vmem:[#allocation10 + $0xd8] sm:$0xff]
        %v1484 = vld [vmem:[#allocation10 + $0xe0] sm:$0xff]
        %v1485 = vld [vmem:[#allocation10 + $0xe8] sm:$0xff]
        %v1486 = vld [vmem:[#allocation10 + $0xf0] sm:$0xff]
        %v1487 = vld [vmem:[#allocation10 + $0xf8] sm:$0xff]
        %v1488 = vld [vmem:[%s5] sm:$0x3]
        %v1490 = vlaneseq
        %v1491 = vshrl.u32 %v1490, 7
        %v1492 = vsub.s32 0, %v1491
        %v1493 = vrot.slane %v1488, %v1492
        %v1494 = vlaneseq
        %v1495 = vshrl.u32 %v1494, 7
        %v1496 = vsub.s32 1, %v1495
        %v1497 = vrot.slane %v1488, %v1496
        %1500 = vmatprep.subr.mxu0 %v1457
        %1501 = vmatpush1.msra.mxu0 %v1456
        %1502 = vmatprep.subr.mxu0 %v1459
        %1503 = vmatpush1.msra.mxu0 %v1458
        %1504 = vmatprep.subr.mxu0 %v1461
        %1505 = vmatpush1.msra.mxu0 %v1460
        %1506 = vmatprep.subr.mxu0 %v1463
        %1507 = vmatpush1.msra.mxu0 %v1462
        %1508 = vmatprep.subr.mxu0 %v1465
        %1509 = vmatpush1.msra.mxu0 %v1464
        %1510 = vmatprep.subr.mxu0 %v1467
        %1511 = vmatpush1.msra.mxu0 %v1466
        %1512 = vmatprep.subr.mxu0 %v1469
        %1513 = vmatpush1.msra.mxu0 %v1468
        %1514 = vmatprep.subr.mxu0 %v1471
        %1515 = vmatpush1.msra.mxu0 %v1470
        %1516 = vmatprep.subr.mxu0 %v1473
        %1517 = vmatpush1.msra.mxu0 %v1472
        %1518 = vmatprep.subr.mxu0 %v1475
        %1519 = vmatpush1.msra.mxu0 %v1474
        %1520 = vmatprep.subr.mxu0 %v1477
        %1521 = vmatpush1.msra.mxu0 %v1476
        %1522 = vmatprep.subr.mxu0 %v1479
        %1523 = vmatpush1.msra.mxu0 %v1478
        %1524 = vmatprep.subr.mxu0 %v1481
        %1525 = vmatpush1.msra.mxu0 %v1480
        %1526 = vmatprep.subr.mxu0 %v1483
        %1527 = vmatpush1.msra.mxu0 %v1482
        %1528 = vmatprep.subr.mxu0 %v1485
        %1529 = vmatpush1.msra.mxu0 %v1484
        %1530 = vmatprep.subr.mxu0 %v1487
        %1531 = vmatpush1.msra.mxu0 %v1486
        %1532 = vmatprep.subr.mxu0 0.0
        %1533 = vmatpush1.msra.mxu0 0.0
        %1534 = vmatprep.subr.mxu0 0.0
        %1535 = vmatpush1.msra.mxu0 0.0
        %1536 = vmatprep.subr.mxu0 0.0
        %1537 = vmatpush1.msra.mxu0 0.0
        %1538 = vmatprep.subr.mxu0 0.0
        %1539 = vmatpush1.msra.mxu0 0.0
        %1540 = vmatprep.subr.mxu0 0.0
        %1541 = vmatpush1.msra.mxu0 0.0
        %1542 = vmatprep.subr.mxu0 0.0
        %1543 = vmatpush1.msra.mxu0 0.0
        %1544 = vmatprep.subr.mxu0 0.0
        %1545 = vmatpush1.msra.mxu0 0.0
        %1546 = vmatprep.subr.mxu0 0.0
        %1547 = vmatpush1.msra.mxu0 0.0
        %1548 = vmatprep.subr.mxu0 0.0
        %1549 = vmatpush1.msra.mxu0 0.0
        %1550 = vmatprep.subr.mxu0 0.0
        %1551 = vmatpush1.msra.mxu0 0.0
        %1552 = vmatprep.subr.mxu0 0.0
        %1553 = vmatpush1.msra.mxu0 0.0
        %1554 = vmatprep.subr.mxu0 0.0
        %1555 = vmatpush1.msra.mxu0 0.0
        %1556 = vmatprep.subr.mxu0 0.0
        %1557 = vmatpush1.msra.mxu0 0.0
        %1558 = vmatprep.subr.mxu0 0.0
        %1559 = vmatpush1.msra.mxu0 0.0
        %1560 = vmatprep.subr.mxu0 0.0
        %1561 = vmatpush1.msra.mxu0 0.0
        %1562 = vmatprep.subr.mxu0 0.0
        %1563 = vmatpush1.msra.mxu0 0.0
        %1564 = vmatprep.mubr.f32.mxu0 0.0
        %1565 = vmatmul.mubr.f32.gmra.mrb[0].mxu0 %v1455
        %v1566 = vpop.f32.mrb[0].mxu0
        %v1567 = vadd.f32 %v1493, %v1566
        %v1568 = vpop.f32.mrb[0].mxu0
        %v1569 = vadd.f32 %v1497, %v1568
        %1570 = vdwg.mxu0
        %v1571 = vmax.f32 %v1567, 0.0
        %v1572 = vmax.f32 %v1569, 0.0
        %v1573 = vld [vmem:[#allocation12] sm:$0xff]
        %v1574 = vld [vmem:[#allocation12 + $0x8] sm:$0xff]
        %v1575 = vld [vmem:[#allocation12 + $0x10] sm:$0xff]
        %v1576 = vld [vmem:[#allocation12 + $0x18] sm:$0xff]
        %v1577 = vld [vmem:[#allocation12 + $0x20] sm:$0xff]
        %v1578 = vld [vmem:[#allocation12 + $0x28] sm:$0xff]
        %v1579 = vld [vmem:[#allocation12 + $0x30] sm:$0xff]
        %v1580 = vld [vmem:[#allocation12 + $0x38] sm:$0xff]
        %v1581 = vld [vmem:[#allocation12 + $0x40] sm:$0xff]
        %v1582 = vld [vmem:[#allocation12 + $0x48] sm:$0xff]
        %v1583 = vld [vmem:[#allocation12 + $0x50] sm:$0xff]
        %v1584 = vld [vmem:[#allocation12 + $0x58] sm:$0xff]
        %v1585 = vld [vmem:[#allocation12 + $0x60] sm:$0xff]
        %v1586 = vld [vmem:[#allocation12 + $0x68] sm:$0xff]
        %v1587 = vld [vmem:[#allocation12 + $0x70] sm:$0xff]
        %v1588 = vld [vmem:[#allocation12 + $0x78] sm:$0xff]
        %v1589 = vld [vmem:[#allocation12 + $0x80] sm:$0xff]
        %v1590 = vld [vmem:[#allocation12 + $0x88] sm:$0xff]
        %v1591 = vld [vmem:[#allocation12 + $0x90] sm:$0xff]
        %v1592 = vld [vmem:[#allocation12 + $0x98] sm:$0xff]
        %v1593 = vld [vmem:[#allocation12 + $0xa0] sm:$0xff]
        %v1594 = vld [vmem:[#allocation12 + $0xa8] sm:$0xff]
        %v1595 = vld [vmem:[#allocation12 + $0xb0] sm:$0xff]
        %v1596 = vld [vmem:[#allocation12 + $0xb8] sm:$0xff]
        %v1597 = vld [vmem:[#allocation12 + $0xc0] sm:$0xff]
        %v1598 = vld [vmem:[#allocation12 + $0xc8] sm:$0xff]
        %v1599 = vld [vmem:[#allocation12 + $0xd0] sm:$0xff]
        %v1600 = vld [vmem:[#allocation12 + $0xd8] sm:$0xff]
        %v1601 = vld [vmem:[#allocation12 + $0xe0] sm:$0xff]
        %v1602 = vld [vmem:[#allocation12 + $0xe8] sm:$0xff]
        %v1603 = vld [vmem:[#allocation12 + $0xf0] sm:$0xff]
        %v1604 = vld [vmem:[#allocation12 + $0xf8] sm:$0xff]
        %v1605 = vlaneseq
        %v1606 = vshrl.u32 %v1605, 7
        %v1607 = vsub.s32 3, %v1606
        %v1608 = vrot.slane %v1340, %v1607
        %1609 = vmatprep.subr.mxu0 0.0
        %1610 = vmatpush1.msra.mxu0 %v1573
        %1611 = vmatprep.subr.mxu0 0.0
        %1612 = vmatpush1.msra.mxu0 %v1574
        %1613 = vmatprep.subr.mxu0 0.0
        %1614 = vmatpush1.msra.mxu0 %v1575
        %1615 = vmatprep.subr.mxu0 0.0
        %1616 = vmatpush1.msra.mxu0 %v1576
        %1617 = vmatprep.subr.mxu0 0.0
        %1618 = vmatpush1.msra.mxu0 %v1577
        %1619 = vmatprep.subr.mxu0 0.0
        %1620 = vmatpush1.msra.mxu0 %v1578
        %1621 = vmatprep.subr.mxu0 0.0
        %1622 = vmatpush1.msra.mxu0 %v1579
        %1623 = vmatprep.subr.mxu0 0.0
        %1624 = vmatpush1.msra.mxu0 %v1580
        %1625 = vmatprep.subr.mxu0 0.0
        %1626 = vmatpush1.msra.mxu0 %v1581
        %1627 = vmatprep.subr.mxu0 0.0
        %1628 = vmatpush1.msra.mxu0 %v1582
        %1629 = vmatprep.subr.mxu0 0.0
        %1630 = vmatpush1.msra.mxu0 %v1583
        %1631 = vmatprep.subr.mxu0 0.0
        %1632 = vmatpush1.msra.mxu0 %v1584
        %1633 = vmatprep.subr.mxu0 0.0
        %1634 = vmatpush1.msra.mxu0 %v1585
        %1635 = vmatprep.subr.mxu0 0.0
        %1636 = vmatpush1.msra.mxu0 %v1586
        %1637 = vmatprep.subr.mxu0 0.0
        %1638 = vmatpush1.msra.mxu0 %v1587
        %1639 = vmatprep.subr.mxu0 0.0
        %1640 = vmatpush1.msra.mxu0 %v1588
        %1641 = vmatprep.subr.mxu0 0.0
        %1642 = vmatpush1.msra.mxu0 %v1589
        %1643 = vmatprep.subr.mxu0 0.0
        %1644 = vmatpush1.msra.mxu0 %v1590
        %1645 = vmatprep.subr.mxu0 0.0
        %1646 = vmatpush1.msra.mxu0 %v1591
        %1647 = vmatprep.subr.mxu0 0.0
        %1648 = vmatpush1.msra.mxu0 %v1592
        %1649 = vmatprep.subr.mxu0 0.0
        %1650 = vmatpush1.msra.mxu0 %v1593
        %1651 = vmatprep.subr.mxu0 0.0
        %1652 = vmatpush1.msra.mxu0 %v1594
        %1653 = vmatprep.subr.mxu0 0.0
        %1654 = vmatpush1.msra.mxu0 %v1595
        %1655 = vmatprep.subr.mxu0 0.0
        %1656 = vmatpush1.msra.mxu0 %v1596
        %1657 = vmatprep.subr.mxu0 0.0
        %1658 = vmatpush1.msra.mxu0 %v1597
        %1659 = vmatprep.subr.mxu0 0.0
        %1660 = vmatpush1.msra.mxu0 %v1598
        %1661 = vmatprep.subr.mxu0 0.0
        %1662 = vmatpush1.msra.mxu0 %v1599
        %1663 = vmatprep.subr.mxu0 0.0
        %1664 = vmatpush1.msra.mxu0 %v1600
        %1665 = vmatprep.subr.mxu0 0.0
        %1666 = vmatpush1.msra.mxu0 %v1601
        %1667 = vmatprep.subr.mxu0 0.0
        %1668 = vmatpush1.msra.mxu0 %v1602
        %1669 = vmatprep.subr.mxu0 0.0
        %1670 = vmatpush1.msra.mxu0 %v1603
        %1671 = vmatprep.subr.mxu0 0.0
        %1672 = vmatpush1.msra.mxu0 %v1604
        %1673 = vmatprep.mubr.f32.mxu0 %v1572
        %1674 = vmatmul.mubr.f32.gmra.mrb[0].mxu0 %v1571
        %v1675 = vpop.f32.mrb[0].mxu0
        %v1676 = vadd.f32 %v1608, %v1675
        %v1677 = vpop.f32.mrb[0].mxu0
        %1678 = vdwg.mxu0
        %v1679 = vadd.f32 %v1455, %v1676
        %1680 = vadd.xlane.f32.xlu0 %v1679
        %v1681 = vpop.xlane.xlu0 %1680
        %v1682 = vmul.f32 %v1681, 0.0078125
        %v1683 = vmul.f32 %v1679, %v1679
        %1684 = vadd.xlane.f32.xlu0 %v1683
        %v1685 = vpop.xlane.xlu0 %1684
        %v1686 = vmul.f32 %v1685, 0.0078125
        %v1687 = vmul.f32 %v1682, %v1682
        %v1688 = vsub.f32 %v1686, %v1687
        %v1689 = vsub.f32 %v1679, %v1682
        %v1690 = vadd.f32 %v1688, 1e-05
        %v1691 = vrsqrt.pop %v1690
        %v1692 = vmul.f32 %v1689, %v1691
        %v1693 = vlaneseq
        %v1694 = vshrl.u32 %v1693, 7
        %v1695 = vsub.s32 4, %v1694
        %v1696 = vrot.slane %v1340, %v1695
        %v1697 = vmul.f32 %v1692, %v1696
        %v1698 = vlaneseq
        %v1699 = vshrl.u32 %v1698, 7
        %v1700 = vsub.s32 5, %v1699
        %v1701 = vrot.slane %v1340, %v1700
        %v1702 = vadd.f32 %v1697, %v1701
        %1703 = vst [vmem:[%s395] sm:$0xff] %v1702
        %s1704 = sand.u32 %s222, 1
        %s1705 = scalar_lea.sflag [#allocation6], %s1704
        %s1706 = sand.u32 %s222, 1
        %s1707 = smul.addr %s1706, 8
        %s1708 = scalar_lea.vmem [#allocation13], %s1707
        // Predicated region
        $region77: #{tpu_custom_call.1} parent=51 // pred_check
          %p1709 = pneg %p232
        $region78: #{tpu_custom_call.1} parent=51 // pred_check_branch
          %1711 = sbr.rel (%p1709) target = $region80
        $region79: #{tpu_custom_call.1} parent=51 // pred_region
          %s1713 = ssub.s32 128, 128
          %1714 = vsyncadd %s1705, %s1713
          %s1715 = smul.addr %s31, 2
          %s1716 = sadd.s32 %s32, %s1715
          %s1717 = smul.addr %s1716, 128
          %s1718 = scalar_lea.hbm %s8, %s1717
          %s1720 = sshll.u32 %s1708, 4
          %s1721 = int_to_ptr.vmem [resolvable:$true] %s1720
          %1723 = dma.vmem_to_hbm [thread:$0]  %s1721, 128, %s1718, %s1705
        $region80: #{tpu_custom_call.1} parent=51 // pred_fallthru
          _
      $region52: #{tpu_custom_call.1} parent=5 // pred_fallthru
        _
      %p1724 = scmp.le.s32.totalorder 2, %s22
      // Predicated region
      $region81: #{tpu_custom_call.1} parent=5 // pred_check
        %p1725 = pneg %p1724
      $region82: #{tpu_custom_call.1} parent=5 // pred_check_branch
        %1727 = sbr.rel (%p1725) target = $region84
      $region83: #{tpu_custom_call.1} parent=5 // pred_region
        %s1728 = ssub.s32 %s22, 2
        // Predicated region
        $region85: #{tpu_custom_call.1} parent=83 // pred_check
          %p1729 = pneg %p238
        $region86: #{tpu_custom_call.1} parent=83 // pred_check_branch
          %1731 = sbr.rel (%p1729) target = $region88
        $region87: #{tpu_custom_call.1} parent=83 // pred_region
          %s1732 = sand.u32 %s223, 1
          %s1733 = scalar_lea.sflag [#allocation6], %s1732
          %s1734 = sand.u32 %s223, 1
          %s1735 = smul.addr %s1734, 8
          %s1736 = scalar_lea.vmem [#allocation13], %s1735
          %1737 = dma.done %s1733, 128
        $region88: #{tpu_custom_call.1} parent=83 // pred_fallthru
          _
      $region84: #{tpu_custom_call.1} parent=5 // pred_fallthru
        _
    $region6: #{tpu_custom_call.1} parent=1 // loop_footer
      %s26 = sadd.s32 1, %s22
    $region7: #{tpu_custom_call.1} parent=1 // loop_footer_branch
      %21 = sbr.rel target = $region3
    $region8: #{tpu_custom_call.1} parent=1 // loop_exit
      _
    %1738 = vsyncpa [#allocation5], 1
    %s1739 = scalar_lea.sflag [#allocation5], 1
    %1740 = vsyncpa %s1739, 1
    %1741 = vsyncpa [#allocation8], 1
    %1742 = vsyncpa [#allocation11], 1
    %1743 = vsyncpa [#allocation6], 1
    %s1744 = scalar_lea.sflag [#allocation6], 1
    %1745 = vsyncpa %s1744, 1

</llo_original>
